<compile_context>
chip_gen: v7x
topology: tpu7x:2x2x1
jax: 0.10.0
libtpu: 0.0.40
codegen_flags: <defaults>
</compile_context>

<pallas_src>
import math
from functools import partial

import jax
import jax.numpy as jnp
from jax import lax
from jax.experimental import pallas as pl
from jax.experimental.pallas import tpu as pltpu


# ----------------------------------------------------------------------------
# Kernel
# ----------------------------------------------------------------------------

def _gelu_exact(x):
    # PyTorch nn.GELU() default = exact erf formulation.
    return 0.5 * x * (1.0 + lax.erf(x * (1.0 / math.sqrt(2.0))))


def packed_heads_kernel(xr_ref, xm_ref, xc_ref, xf_ref,
                        w1r_ref, w1m_ref, w1c_ref, w1f_ref, b1_ref,
                        w2_ref, b2_ref, w3_ref, b3_ref, w4_ref, b4_ref,
                        out_ref):
    """4 heads (Linear->GELU x3 -> Linear) packed into 128-lane matmuls.

    Layer-1 weights are column-padded so each head's output lands in its own
    32-lane block; layers 2/3 use block-diagonal stacked weights; layer-4
    weight/bias are pre-scaled by softmax(lambda), so its matmul emits the
    weighted vote directly.  Morgan PE is folded into b1.
    """
    h = (jnp.dot(xr_ref[...], w1r_ref[...], preferred_element_type=jnp.float32)
         + jnp.dot(xm_ref[...], w1m_ref[...], preferred_element_type=jnp.float32)
         + jnp.dot(xc_ref[...], w1c_ref[...], preferred_element_type=jnp.float32)
         + jnp.dot(xf_ref[...], w1f_ref[...], preferred_element_type=jnp.float32))
    h = _gelu_exact(h + b1_ref[...])
    h = _gelu_exact(jnp.dot(h, w2_ref[...], preferred_element_type=jnp.float32) + b2_ref[...])
    h = _gelu_exact(jnp.dot(h, w3_ref[...], preferred_element_type=jnp.float32) + b3_ref[...])
    out_ref[...] = jnp.dot(h, w4_ref[...], preferred_element_type=jnp.float32) + b4_ref[...]


# ----------------------------------------------------------------------------
# Wrapper (weight stacking / folding + gridded pallas_call)
# ----------------------------------------------------------------------------

def _round_up(x, m):
    return -(-x // m) * m


def _pad_cols_to_block(w, idx, hid):
    """Place (in, hid) weight into columns [idx*hid, (idx+1)*hid) of (in, 4*hid)."""
    return jnp.pad(w, ((0, 0), (idx * hid, (3 - idx) * hid)))


def _block_diag4(ws):
    """Block-diagonal (4h, 4h) from four (h, h) blocks."""
    h = ws[0].shape[0]
    cols = [jnp.pad(w, ((i * h, (3 - i) * h), (0, 0))) for i, w in enumerate(ws)]
    return jnp.concatenate(cols, axis=1)


@partial(jax.jit, static_argnames=("input_dtype", "block_b"))
def property_regressors_forward(rdkit, morgan, chembert2a, molformer,
                                p_rdkit, p_morgan, p_chem, p_mol,
                                lambdas, morgan_pe,
                                input_dtype=jnp.bfloat16, block_b=512):
    B = rdkit.shape[0]
    d_r, d_m, d_c, d_f = (rdkit.shape[1], morgan.shape[1],
                          chembert2a.shape[1], molformer.shape[1])
    hid = p_rdkit[0].shape[1]
    out_dim = p_rdkit[-2].shape[1]
    H4 = 4 * hid

    # ---- fold / stack parameters (all wrapper-side, cheap, fused under jit) ----
    w1_r, b1_r, w2_r, b2_r, w3_r, b3_r, w4_r, b4_r = p_rdkit
    w1_m, b1_m, w2_m, b2_m, w3_m, b3_m, w4_m, b4_m = p_morgan
    w1_c, b1_c, w2_c, b2_c, w3_c, b3_c, w4_c, b4_c = p_chem
    w1_f, b1_f, w2_f, b2_f, w3_f, b3_f, w4_f, b4_f = p_mol

    norm_lam = jax.nn.softmax(lambdas, axis=0)                # (4, 1)
    lam = norm_lam.reshape(4)

    # Morgan PE fold (exact identity, done in f32 before any bf16 cast).
    b1_m_eff = morgan_pe @ w1_m + b1_m

    # Layer-1 weights: pad each head's hid columns into its 32-lane block.
    w1r_s = _pad_cols_to_block(w1_r, 0, hid).astype(input_dtype)
    w1m_s = _pad_cols_to_block(w1_m, 1, hid).astype(input_dtype)
    w1c_s = _pad_cols_to_block(w1_c, 2, hid).astype(input_dtype)
    w1f_s = _pad_cols_to_block(w1_f, 3, hid).astype(input_dtype)
    b1_s = jnp.concatenate([b1_r, b1_m_eff, b1_c, b1_f], axis=-1)          # (1, 4h)

    # Layers 2/3: block-diagonal stacked weights, concatenated biases.
    w2_s = _block_diag4([w2_r, w2_m, w2_c, w2_f])                          # (4h, 4h)
    b2_s = jnp.concatenate([b2_r, b2_m, b2_c, b2_f], axis=-1)
    w3_s = _block_diag4([w3_r, w3_m, w3_c, w3_f])
    b3_s = jnp.concatenate([b3_r, b3_m, b3_c, b3_f], axis=-1)

    # Layer 4: lambda-weighted vote folded into the stacked weight/bias.
    w4_s = jnp.concatenate([lam[0] * w4_r, lam[1] * w4_m,
                            lam[2] * w4_c, lam[3] * w4_f], axis=0)         # (4h, out)
    b4_s = lam[0] * b4_r + lam[1] * b4_m + lam[2] * b4_c + lam[3] * b4_f   # (1, out)

    # ---- batch tiling (bf16 inputs need 16-row sublane multiples) ----
    sub = 16 if jnp.dtype(input_dtype).itemsize < 4 else 8
    tb = min(block_b, _round_up(B, sub))
    Bp = _round_up(B, tb)

    def pad_cast(x):
        x = x.astype(input_dtype)
        return x if x.shape[0] == Bp else jnp.pad(x, ((0, Bp - x.shape[0]), (0, 0)))

    operands = (pad_cast(rdkit), pad_cast(morgan), pad_cast(chembert2a),
                pad_cast(molformer),
                w1r_s, w1m_s, w1c_s, w1f_s, b1_s,
                w2_s, b2_s, w3_s, b3_s, w4_s, b4_s)

    def bspec(feat_dim):                       # batch-tiled inputs
        return pl.BlockSpec((tb, feat_dim), lambda i: (i, 0))

    def wspec(arr):                            # VMEM-resident weights (fetched once)
        return pl.BlockSpec(arr.shape, lambda i: (0, 0))

    in_specs = ([bspec(d_r), bspec(d_m), bspec(d_c), bspec(d_f)]
                + [wspec(a) for a in operands[4:]])
    out_specs = pl.BlockSpec((tb, out_dim), lambda i: (i, 0))

    flops = 2 * Bp * ((d_r + d_m + d_c + d_f) * H4 + 2 * H4 * H4 + H4 * out_dim)
    transcendentals = 3 * Bp * H4
    bytes_accessed = (sum(int(a.size) * a.dtype.itemsize for a in operands)
                      + Bp * out_dim * 4)

    out = pl.pallas_call(
        packed_heads_kernel,
        out_shape=jax.ShapeDtypeStruct((Bp, out_dim), jnp.float32),
        grid=(Bp // tb,),
        in_specs=in_specs,
        out_specs=out_specs,
        compiler_params=pltpu.CompilerParams(
            dimension_semantics=("parallel",),
            vmem_limit_bytes=32 * 1024 * 1024),
        cost_estimate=pl.CostEstimate(flops=flops,
                                      transcendentals=transcendentals,
                                      bytes_accessed=bytes_accessed),
    )(*operands)
    return out[:B], norm_lam


# ----------------------------------------------------------------------------
# Parameter / buffer construction (deterministic, mirrors PyTorch shapes)
# ----------------------------------------------------------------------------

def make_linear_params(key, in_dim, out_dim):
    k = 1.0 / math.sqrt(in_dim)
    kw, kb = jax.random.split(key)
    w = jax.random.uniform(kw, (in_dim, out_dim), jnp.float32, -k, k)   # (in, out)
    b = jax.random.uniform(kb, (1, out_dim), jnp.float32, -k, k)
    return w, b


def make_head_params(key, in_dim, hid, out):
    ks = jax.random.split(key, 4)
    w1, b1 = make_linear_params(ks[0], in_dim, hid)
    w2, b2 = make_linear_params(ks[1], hid, hid)
    w3, b3 = make_linear_params(ks[2], hid, hid)
    w4, b4 = make_linear_params(ks[3], hid, out)
    return (w1, b1, w2, b2, w3, b3, w4, b4)


def positional_encoding(d_model):
    # Matches PositionalEncoding.__init__ of the spec exactly.
    position = jnp.arange(d_model, dtype=jnp.float32)
    div_term = jnp.exp(jnp.arange(0, d_model, 2, dtype=jnp.float32)
                       * (-math.log(10000.0) / d_model))[: d_model // 2]
    pe = jnp.zeros((d_model,), jnp.float32)
    pe = pe.at[0::2].set(jnp.sin(position[0::2] * div_term))
    pe = pe.at[1::2].set(jnp.cos(position[1::2] * div_term))
    return pe.reshape(1, d_model)


# ----------------------------------------------------------------------------
# Pure-JAX reference (sanity check only)
# ----------------------------------------------------------------------------

def _ref_head(x, params):
    w1, b1, w2, b2, w3, b3, w4, b4 = params
    h = _gelu_exact(x @ w1 + b1)
    h = _gelu_exact(h @ w2 + b2)
    h = _gelu_exact(h @ w3 + b3)
    return h @ w4 + b4


def _ref_forward(rdkit, morgan, chembert2a, molformer,
                 p_rdkit, p_morgan, p_chem, p_mol, lambdas, morgan_pe):
    morgan = morgan + morgan_pe
    outs = jnp.stack([_ref_head(rdkit, p_rdkit), _ref_head(morgan, p_morgan),
                      _ref_head(chembert2a, p_chem), _ref_head(molformer, p_mol)],
                     axis=1)
    nl = jax.nn.softmax(lambdas, axis=0)                 # (4, 1)
    after = jnp.einsum('bfo,bfo->bo',
                       jnp.broadcast_to(nl[None], (rdkit.shape[0], 4, 1)), outs)
    return after, nl


# ----------------------------------------------------------------------------
# Main
# ----------------------------------------------------------------------------

if __name__ == "__main__":
    B, HID, OUT = 2, 32, 8
    key = jax.random.PRNGKey(0)
    ks = jax.random.split(key, 8)

    rdkit = jax.random.normal(ks[0], (B, 20), jnp.float32)
    morgan = jax.random.normal(ks[1], (B, 2048), jnp.float32)
    chembert2a = jax.random.normal(ks[2], (B, 600), jnp.float32)
    molformer = jax.random.normal(ks[3], (B, 768), jnp.float32)

    p_rdkit = make_head_params(ks[4], 20, HID, OUT)
    p_morgan = make_head_params(ks[5], 2048, HID, OUT)
    p_chem = make_head_params(ks[6], 600, HID, OUT)
    p_mol = make_head_params(ks[7], 768, HID, OUT)
    lambdas = jnp.ones((4, 1), jnp.float32)              # nn.Parameter(torch.ones([4,1]))
    morgan_pe = positional_encoding(2048)

    after_vote, norm_lam = property_regressors_forward(
        rdkit, morgan, chembert2a, molformer,
        p_rdkit, p_morgan, p_chem, p_mol, lambdas, morgan_pe)
    after_vote = jax.block_until_ready(after_vote)
    norm_lam = jax.block_until_ready(norm_lam)

    ref_after, ref_nl = _ref_forward(rdkit, morgan, chembert2a, molformer,
                                     p_rdkit, p_morgan, p_chem, p_mol,
                                     lambdas, morgan_pe)
    assert after_vote.shape == (B, OUT) and norm_lam.shape == (4, 1)
    # 2e-2 tolerance covers the bf16 cast of the feature inputs / layer-1
    # weights vs. the all-f32 reference (kernel accumulation stays f32).
    assert jnp.allclose(after_vote, ref_after, atol=2e-2, rtol=2e-2)
    assert jnp.allclose(norm_lam, ref_nl, atol=1e-5, rtol=1e-5)

    print("KERNEL_OK")
</pallas_src>

<mosaic_0001>
module attributes {stable_mosaic.version = 11 : i64} {
  func.func @packed_heads_kernel(%arg0: i32, %arg1: memref<16x20xbf16, #tpu.memory_space<vmem>>, %arg2: memref<16x2048xbf16, #tpu.memory_space<vmem>>, %arg3: memref<16x600xbf16, #tpu.memory_space<vmem>>, %arg4: memref<16x768xbf16, #tpu.memory_space<vmem>>, %arg5: memref<20x128xbf16, #tpu.memory_space<vmem>>, %arg6: memref<2048x128xbf16, #tpu.memory_space<vmem>>, %arg7: memref<600x128xbf16, #tpu.memory_space<vmem>>, %arg8: memref<768x128xbf16, #tpu.memory_space<vmem>>, %arg9: memref<1x128xf32, #tpu.memory_space<vmem>>, %arg10: memref<128x128xf32, #tpu.memory_space<vmem>>, %arg11: memref<1x128xf32, #tpu.memory_space<vmem>>, %arg12: memref<128x128xf32, #tpu.memory_space<vmem>>, %arg13: memref<1x128xf32, #tpu.memory_space<vmem>>, %arg14: memref<128x8xf32, #tpu.memory_space<vmem>>, %arg15: memref<1x8xf32, #tpu.memory_space<vmem>>, %arg16: memref<16x8xf32, #tpu.memory_space<vmem>>) attributes {dimension_semantics = [#tpu.dimension_semantics<parallel>], iteration_bounds = array<i64: 1>, scalar_prefetch = 0 : i64, scratch_operands = 0 : i64, tpu.core_type = #tpu.core_type<tc>, window_params = [{transform_indices = @transform_0, window_bounds = array<i64: 16, 20>}, {transform_indices = @transform_1, window_bounds = array<i64: 16, 2048>}, {transform_indices = @transform_2, window_bounds = array<i64: 16, 600>}, {transform_indices = @transform_3, window_bounds = array<i64: 16, 768>}, {pipeline_mode = #tpu.pipeline_mode<synchronous>, transform_indices = @transform_4, window_bounds = array<i64: 20, 128>}, {pipeline_mode = #tpu.pipeline_mode<synchronous>, transform_indices = @transform_5, window_bounds = array<i64: 2048, 128>}, {pipeline_mode = #tpu.pipeline_mode<synchronous>, transform_indices = @transform_6, window_bounds = array<i64: 600, 128>}, {pipeline_mode = #tpu.pipeline_mode<synchronous>, transform_indices = @transform_7, window_bounds = array<i64: 768, 128>}, {pipeline_mode = #tpu.pipeline_mode<synchronous>, transform_indices = @transform_8, window_bounds = array<i64: 1, 128>}, {pipeline_mode = #tpu.pipeline_mode<synchronous>, transform_indices = @transform_9, window_bounds = array<i64: 128, 128>}, {pipeline_mode = #tpu.pipeline_mode<synchronous>, transform_indices = @transform_10, window_bounds = array<i64: 1, 128>}, {pipeline_mode = #tpu.pipeline_mode<synchronous>, transform_indices = @transform_11, window_bounds = array<i64: 128, 128>}, {pipeline_mode = #tpu.pipeline_mode<synchronous>, transform_indices = @transform_12, window_bounds = array<i64: 1, 128>}, {pipeline_mode = #tpu.pipeline_mode<synchronous>, transform_indices = @transform_13, window_bounds = array<i64: 128, 8>}, {pipeline_mode = #tpu.pipeline_mode<synchronous>, transform_indices = @transform_14, window_bounds = array<i64: 1, 8>}, {transform_indices = @transform_15, window_bounds = array<i64: 16, 8>}]} {
    %c0 = arith.constant 0 : index
    %c0_0 = arith.constant 0 : index
    %0 = vector.load %arg1[%c0, %c0_0] : memref<16x20xbf16, #tpu.memory_space<vmem>>, vector<16x20xbf16>
    %c0_1 = arith.constant 0 : index
    %c0_2 = arith.constant 0 : index
    %1 = vector.load %arg5[%c0_1, %c0_2] : memref<20x128xbf16, #tpu.memory_space<vmem>>, vector<20x128xbf16>
    %cst = arith.constant dense<0.000000e+00> : vector<16x128xf32>
    %2 = tpu.matmul %0, %1, %cst {dimension_numbers = #tpu.dot_dimension_numbers<[1], [0], [0], [1], [0, 0, 1, 1], [], []>} : vector<16x20xbf16>, vector<20x128xbf16>, vector<16x128xf32> -> vector<16x128xf32>
    %c0_3 = arith.constant 0 : index
    %c0_4 = arith.constant 0 : index
    %3 = vector.load %arg2[%c0_3, %c0_4] : memref<16x2048xbf16, #tpu.memory_space<vmem>>, vector<16x2048xbf16>
    %c0_5 = arith.constant 0 : index
    %c0_6 = arith.constant 0 : index
    %4 = vector.load %arg6[%c0_5, %c0_6] : memref<2048x128xbf16, #tpu.memory_space<vmem>>, vector<2048x128xbf16>
    %cst_7 = arith.constant dense<0.000000e+00> : vector<16x128xf32>
    %5 = tpu.matmul %3, %4, %cst_7 {dimension_numbers = #tpu.dot_dimension_numbers<[1], [0], [0], [1], [0, 0, 1, 1], [], []>} : vector<16x2048xbf16>, vector<2048x128xbf16>, vector<16x128xf32> -> vector<16x128xf32>
    %6 = arith.addf %2, %5 : vector<16x128xf32>
    %c0_8 = arith.constant 0 : index
    %c0_9 = arith.constant 0 : index
    %7 = vector.load %arg3[%c0_8, %c0_9] : memref<16x600xbf16, #tpu.memory_space<vmem>>, vector<16x600xbf16>
    %c0_10 = arith.constant 0 : index
    %c0_11 = arith.constant 0 : index
    %8 = vector.load %arg7[%c0_10, %c0_11] : memref<600x128xbf16, #tpu.memory_space<vmem>>, vector<600x128xbf16>
    %cst_12 = arith.constant dense<0.000000e+00> : vector<16x128xf32>
    %9 = tpu.matmul %7, %8, %cst_12 {dimension_numbers = #tpu.dot_dimension_numbers<[1], [0], [0], [1], [0, 0, 1, 1], [], []>} : vector<16x600xbf16>, vector<600x128xbf16>, vector<16x128xf32> -> vector<16x128xf32>
    %10 = arith.addf %6, %9 : vector<16x128xf32>
    %c0_13 = arith.constant 0 : index
    %c0_14 = arith.constant 0 : index
    %11 = vector.load %arg4[%c0_13, %c0_14] : memref<16x768xbf16, #tpu.memory_space<vmem>>, vector<16x768xbf16>
    %c0_15 = arith.constant 0 : index
    %c0_16 = arith.constant 0 : index
    %12 = vector.load %arg8[%c0_15, %c0_16] : memref<768x128xbf16, #tpu.memory_space<vmem>>, vector<768x128xbf16>
    %cst_17 = arith.constant dense<0.000000e+00> : vector<16x128xf32>
    %13 = tpu.matmul %11, %12, %cst_17 {dimension_numbers = #tpu.dot_dimension_numbers<[1], [0], [0], [1], [0, 0, 1, 1], [], []>} : vector<16x768xbf16>, vector<768x128xbf16>, vector<16x128xf32> -> vector<16x128xf32>
    %14 = arith.addf %10, %13 : vector<16x128xf32>
    %c0_18 = arith.constant 0 : index
    %c0_19 = arith.constant 0 : index
    %15 = vector.load %arg9[%c0_18, %c0_19] : memref<1x128xf32, #tpu.memory_space<vmem>>, vector<1x128xf32>
    %16 = vector.broadcast %15 : vector<1x128xf32> to vector<16x128xf32>
    %17 = arith.addf %14, %16 : vector<16x128xf32>
    %cst_20 = arith.constant 5.000000e-01 : f32
    %18 = vector.broadcast %cst_20 : f32 to vector<16x128xf32>
    %19 = arith.mulf %18, %17 : vector<16x128xf32>
    %cst_21 = arith.constant 0.707106769 : f32
    %20 = vector.broadcast %cst_21 : f32 to vector<16x128xf32>
    %21 = arith.mulf %17, %20 : vector<16x128xf32>
    %22 = math.erf %21 : vector<16x128xf32>
    %cst_22 = arith.constant 1.000000e+00 : f32
    %23 = vector.broadcast %cst_22 : f32 to vector<16x128xf32>
    %24 = arith.addf %23, %22 : vector<16x128xf32>
    %25 = arith.mulf %19, %24 : vector<16x128xf32>
    %c0_23 = arith.constant 0 : index
    %c0_24 = arith.constant 0 : index
    %26 = vector.load %arg10[%c0_23, %c0_24] : memref<128x128xf32, #tpu.memory_space<vmem>>, vector<128x128xf32>
    %cst_25 = arith.constant dense<0.000000e+00> : vector<16x128xf32>
    %27 = tpu.matmul %25, %26, %cst_25 {dimension_numbers = #tpu.dot_dimension_numbers<[1], [0], [0], [1], [0, 0, 1, 1], [], []>} : vector<16x128xf32>, vector<128x128xf32>, vector<16x128xf32> -> vector<16x128xf32>
    %c0_26 = arith.constant 0 : index
    %c0_27 = arith.constant 0 : index
    %28 = vector.load %arg11[%c0_26, %c0_27] : memref<1x128xf32, #tpu.memory_space<vmem>>, vector<1x128xf32>
    %29 = vector.broadcast %28 : vector<1x128xf32> to vector<16x128xf32>
    %30 = arith.addf %27, %29 : vector<16x128xf32>
    %cst_28 = arith.constant 5.000000e-01 : f32
    %31 = vector.broadcast %cst_28 : f32 to vector<16x128xf32>
    %32 = arith.mulf %31, %30 : vector<16x128xf32>
    %cst_29 = arith.constant 0.707106769 : f32
    %33 = vector.broadcast %cst_29 : f32 to vector<16x128xf32>
    %34 = arith.mulf %30, %33 : vector<16x128xf32>
    %35 = math.erf %34 : vector<16x128xf32>
    %cst_30 = arith.constant 1.000000e+00 : f32
    %36 = vector.broadcast %cst_30 : f32 to vector<16x128xf32>
    %37 = arith.addf %36, %35 : vector<16x128xf32>
    %38 = arith.mulf %32, %37 : vector<16x128xf32>
    %c0_31 = arith.constant 0 : index
    %c0_32 = arith.constant 0 : index
    %39 = vector.load %arg12[%c0_31, %c0_32] : memref<128x128xf32, #tpu.memory_space<vmem>>, vector<128x128xf32>
    %cst_33 = arith.constant dense<0.000000e+00> : vector<16x128xf32>
    %40 = tpu.matmul %38, %39, %cst_33 {dimension_numbers = #tpu.dot_dimension_numbers<[1], [0], [0], [1], [0, 0, 1, 1], [], []>} : vector<16x128xf32>, vector<128x128xf32>, vector<16x128xf32> -> vector<16x128xf32>
    %c0_34 = arith.constant 0 : index
    %c0_35 = arith.constant 0 : index
    %41 = vector.load %arg13[%c0_34, %c0_35] : memref<1x128xf32, #tpu.memory_space<vmem>>, vector<1x128xf32>
    %42 = vector.broadcast %41 : vector<1x128xf32> to vector<16x128xf32>
    %43 = arith.addf %40, %42 : vector<16x128xf32>
    %cst_36 = arith.constant 5.000000e-01 : f32
    %44 = vector.broadcast %cst_36 : f32 to vector<16x128xf32>
    %45 = arith.mulf %44, %43 : vector<16x128xf32>
    %cst_37 = arith.constant 0.707106769 : f32
    %46 = vector.broadcast %cst_37 : f32 to vector<16x128xf32>
    %47 = arith.mulf %43, %46 : vector<16x128xf32>
    %48 = math.erf %47 : vector<16x128xf32>
    %cst_38 = arith.constant 1.000000e+00 : f32
    %49 = vector.broadcast %cst_38 : f32 to vector<16x128xf32>
    %50 = arith.addf %49, %48 : vector<16x128xf32>
    %51 = arith.mulf %45, %50 : vector<16x128xf32>
    %c0_39 = arith.constant 0 : index
    %c0_40 = arith.constant 0 : index
    %52 = vector.load %arg14[%c0_39, %c0_40] : memref<128x8xf32, #tpu.memory_space<vmem>>, vector<128x8xf32>
    %cst_41 = arith.constant dense<0.000000e+00> : vector<16x8xf32>
    %53 = tpu.matmul %51, %52, %cst_41 {dimension_numbers = #tpu.dot_dimension_numbers<[1], [0], [0], [1], [0, 0, 1, 1], [], []>} : vector<16x128xf32>, vector<128x8xf32>, vector<16x8xf32> -> vector<16x8xf32>
    %c0_42 = arith.constant 0 : index
    %c0_43 = arith.constant 0 : index
    %54 = vector.load %arg15[%c0_42, %c0_43] : memref<1x8xf32, #tpu.memory_space<vmem>>, vector<1x8xf32>
    %55 = vector.broadcast %54 : vector<1x8xf32> to vector<16x8xf32>
    %56 = arith.addf %53, %55 : vector<16x8xf32>
    %c0_44 = arith.constant 0 : index
    %c0_45 = arith.constant 0 : index
    %57 = vector.load %arg16[%c0_44, %c0_45] : memref<16x8xf32, #tpu.memory_space<vmem>>, vector<16x8xf32>
    tpu.vector_store %arg16[%c0_44, %c0_45], %56 {strides = array<i32>} : memref<16x8xf32, #tpu.memory_space<vmem>>, vector<16x8xf32>,
    return
  }
  func.func @transform_0(%arg0: i32) -> (i32, i32) {
    %c0_i32 = arith.constant 0 : i32
    %c0_i32_0 = arith.constant 0 : i32
    return %arg0, %c0_i32 : i32, i32
  }
  func.func @transform_1(%arg0: i32) -> (i32, i32) {
    %c0_i32 = arith.constant 0 : i32
    %c0_i32_0 = arith.constant 0 : i32
    return %arg0, %c0_i32 : i32, i32
  }
  func.func @transform_2(%arg0: i32) -> (i32, i32) {
    %c0_i32 = arith.constant 0 : i32
    %c0_i32_0 = arith.constant 0 : i32
    return %arg0, %c0_i32 : i32, i32
  }
  func.func @transform_3(%arg0: i32) -> (i32, i32) {
    %c0_i32 = arith.constant 0 : i32
    %c0_i32_0 = arith.constant 0 : i32
    return %arg0, %c0_i32 : i32, i32
  }
  func.func @transform_4(%arg0: i32) -> (i32, i32) {
    %c0_i32 = arith.constant 0 : i32
    %c0_i32_0 = arith.constant 0 : i32
    %c0_i32_1 = arith.constant 0 : i32
    return %c0_i32, %c0_i32_0 : i32, i32
  }
  func.func @transform_5(%arg0: i32) -> (i32, i32) {
    %c0_i32 = arith.constant 0 : i32
    %c0_i32_0 = arith.constant 0 : i32
    %c0_i32_1 = arith.constant 0 : i32
    return %c0_i32, %c0_i32_0 : i32, i32
  }
  func.func @transform_6(%arg0: i32) -> (i32, i32) {
    %c0_i32 = arith.constant 0 : i32
    %c0_i32_0 = arith.constant 0 : i32
    %c0_i32_1 = arith.constant 0 : i32
    return %c0_i32, %c0_i32_0 : i32, i32
  }
  func.func @transform_7(%arg0: i32) -> (i32, i32) {
    %c0_i32 = arith.constant 0 : i32
    %c0_i32_0 = arith.constant 0 : i32
    %c0_i32_1 = arith.constant 0 : i32
    return %c0_i32, %c0_i32_0 : i32, i32
  }
  func.func @transform_8(%arg0: i32) -> (i32, i32) {
    %c0_i32 = arith.constant 0 : i32
    %c0_i32_0 = arith.constant 0 : i32
    %c0_i32_1 = arith.constant 0 : i32
    return %c0_i32, %c0_i32_0 : i32, i32
  }
  func.func @transform_9(%arg0: i32) -> (i32, i32) {
    %c0_i32 = arith.constant 0 : i32
    %c0_i32_0 = arith.constant 0 : i32
    %c0_i32_1 = arith.constant 0 : i32
    return %c0_i32, %c0_i32_0 : i32, i32
  }
  func.func @transform_10(%arg0: i32) -> (i32, i32) {
    %c0_i32 = arith.constant 0 : i32
    %c0_i32_0 = arith.constant 0 : i32
    %c0_i32_1 = arith.constant 0 : i32
    return %c0_i32, %c0_i32_0 : i32, i32
  }
  func.func @transform_11(%arg0: i32) -> (i32, i32) {
    %c0_i32 = arith.constant 0 : i32
    %c0_i32_0 = arith.constant 0 : i32
    %c0_i32_1 = arith.constant 0 : i32
    return %c0_i32, %c0_i32_0 : i32, i32
  }
  func.func @transform_12(%arg0: i32) -> (i32, i32) {
    %c0_i32 = arith.constant 0 : i32
    %c0_i32_0 = arith.constant 0 : i32
    %c0_i32_1 = arith.constant 0 : i32
    return %c0_i32, %c0_i32_0 : i32, i32
  }
  func.func @transform_13(%arg0: i32) -> (i32, i32) {
    %c0_i32 = arith.constant 0 : i32
    %c0_i32_0 = arith.constant 0 : i32
    %c0_i32_1 = arith.constant 0 : i32
    return %c0_i32, %c0_i32_0 : i32, i32
  }
  func.func @transform_14(%arg0: i32) -> (i32, i32) {
    %c0_i32 = arith.constant 0 : i32
    %c0_i32_0 = arith.constant 0 : i32
    %c0_i32_1 = arith.constant 0 : i32
    return %c0_i32, %c0_i32_0 : i32, i32
  }
  func.func @transform_15(%arg0: i32) -> (i32, i32) {
    %c0_i32 = arith.constant 0 : i32
    %c0_i32_0 = arith.constant 0 : i32
    return %arg0, %c0_i32 : i32, i32
  }
}

</mosaic_0001>

<llo_original>
// kernel: property_regressors_forward.1
$region0: #{property_regressors_forward.1}
  #allocation0 [shape = 'u32[]', space=smem, size = 0x4, offset = 0x4, fixed_abs, tag = 'smem constant byte address 0x4 - core index']
  #allocation1 [shape = 'u32[144,128]{1,0:T(1,128)}', space=vmem, size = 0x12000, scoped, tag = 'internal scratch']
  %s0 = inlined_call_operand.vmem [shape: bf16[16,20], index: 0, kind: input, shape index: {}]
  %s1 = inlined_call_operand.vmem [shape: bf16[16,2048], index: 1, kind: input, shape index: {}]
  %s2 = inlined_call_operand.vmem [shape: bf16[16,600], index: 2, kind: input, shape index: {}]
  %s3 = inlined_call_operand.vmem [shape: bf16[16,768], index: 3, kind: input, shape index: {}]
  %s4 = inlined_call_operand.vmem [shape: bf16[20,128], index: 4, kind: input, shape index: {}]
  %s5 = inlined_call_operand.vmem [shape: bf16[2048,128], index: 5, kind: input, shape index: {}]
  %s6 = inlined_call_operand.vmem [shape: bf16[600,128], index: 6, kind: input, shape index: {}]
  %s7 = inlined_call_operand.vmem [shape: bf16[768,128], index: 7, kind: input, shape index: {}]
  %s8 = inlined_call_operand.vmem [shape: f32[1,128], index: 8, kind: input, shape index: {}]
  %s9 = inlined_call_operand.vmem [shape: f32[128,128], index: 9, kind: input, shape index: {}]
  %s10 = inlined_call_operand.vmem [shape: f32[1,128], index: 10, kind: input, shape index: {}]
  %s11 = inlined_call_operand.vmem [shape: f32[128,128], index: 11, kind: input, shape index: {}]
  %s12 = inlined_call_operand.vmem [shape: f32[1,128], index: 12, kind: input, shape index: {}]
  %s13 = inlined_call_operand.vmem [shape: f32[128,8], index: 13, kind: input, shape index: {}]
  %s14 = inlined_call_operand.vmem [shape: f32[1,8], index: 14, kind: input, shape index: {}]
  %s15 = inlined_call_operand.vmem [shape: f32[16,8], index: 15, kind: output, shape index: {}]
  %s16 = sld [smem:[#allocation0]]
  $region70: #{property_regressors_forward.1} parent=0
    _
  %s18 = ssub.s32 1, %s16
  %s19 = scalar_select 0, %s18, %s16
  // Predicated region
  $region2: #{property_regressors_forward.1} parent=0 // pred_check
    _
  $region3: #{property_regressors_forward.1} parent=0 // pred_check_branch
    %21 = sbr.rel (0) target = $region5
  $region4: #{property_regressors_forward.1} parent=0 // pred_region
    _
  $region5: #{property_regressors_forward.1} parent=0 // pred_fallthru
    _
  // Predicated region
  $region6: #{property_regressors_forward.1} parent=0 // pred_check
    _
  $region7: #{property_regressors_forward.1} parent=0 // pred_check_branch
    %23 = sbr.rel (0) target = $region9
  $region8: #{property_regressors_forward.1} parent=0 // pred_region
    _
  $region9: #{property_regressors_forward.1} parent=0 // pred_fallthru
    _
  // Predicated region
  $region10: #{property_regressors_forward.1} parent=0 // pred_check
    _
  $region11: #{property_regressors_forward.1} parent=0 // pred_check_branch
    %25 = sbr.rel (0) target = $region13
  $region12: #{property_regressors_forward.1} parent=0 // pred_region
    _
  $region13: #{property_regressors_forward.1} parent=0 // pred_fallthru
    _
  // Predicated region
  $region14: #{property_regressors_forward.1} parent=0 // pred_check
    _
  $region15: #{property_regressors_forward.1} parent=0 // pred_check_branch
    %27 = sbr.rel (0) target = $region17
  $region16: #{property_regressors_forward.1} parent=0 // pred_region
    _
  $region17: #{property_regressors_forward.1} parent=0 // pred_fallthru
    _
  // Predicated region
  $region18: #{property_regressors_forward.1} parent=0 // pred_check
    _
  $region19: #{property_regressors_forward.1} parent=0 // pred_check_branch
    %29 = sbr.rel (0) target = $region21
  $region20: #{property_regressors_forward.1} parent=0 // pred_region
    _
  $region21: #{property_regressors_forward.1} parent=0 // pred_fallthru
    _
  // Predicated region
  $region22: #{property_regressors_forward.1} parent=0 // pred_check
    _
  $region23: #{property_regressors_forward.1} parent=0 // pred_check_branch
    %31 = sbr.rel (0) target = $region25
  $region24: #{property_regressors_forward.1} parent=0 // pred_region
    _
  $region25: #{property_regressors_forward.1} parent=0 // pred_fallthru
    _
  // Predicated region
  $region26: #{property_regressors_forward.1} parent=0 // pred_check
    _
  $region27: #{property_regressors_forward.1} parent=0 // pred_check_branch
    %33 = sbr.rel (0) target = $region29
  $region28: #{property_regressors_forward.1} parent=0 // pred_region
    _
  $region29: #{property_regressors_forward.1} parent=0 // pred_fallthru
    _
  // Predicated region
  $region30: #{property_regressors_forward.1} parent=0 // pred_check
    _
  $region31: #{property_regressors_forward.1} parent=0 // pred_check_branch
    %35 = sbr.rel (0) target = $region33
  $region32: #{property_regressors_forward.1} parent=0 // pred_region
    _
  $region33: #{property_regressors_forward.1} parent=0 // pred_fallthru
    _
  // Predicated region
  $region34: #{property_regressors_forward.1} parent=0 // pred_check
    _
  $region35: #{property_regressors_forward.1} parent=0 // pred_check_branch
    %37 = sbr.rel (0) target = $region37
  $region36: #{property_regressors_forward.1} parent=0 // pred_region
    _
  $region37: #{property_regressors_forward.1} parent=0 // pred_fallthru
    _
  // Predicated region
  $region38: #{property_regressors_forward.1} parent=0 // pred_check
    _
  $region39: #{property_regressors_forward.1} parent=0 // pred_check_branch
    %39 = sbr.rel (0) target = $region41
  $region40: #{property_regressors_forward.1} parent=0 // pred_region
    _
  $region41: #{property_regressors_forward.1} parent=0 // pred_fallthru
    _
  // Predicated region
  $region42: #{property_regressors_forward.1} parent=0 // pred_check
    _
  $region43: #{property_regressors_forward.1} parent=0 // pred_check_branch
    %41 = sbr.rel (0) target = $region45
  $region44: #{property_regressors_forward.1} parent=0 // pred_region
    _
  $region45: #{property_regressors_forward.1} parent=0 // pred_fallthru
    _
  // Predicated region
  $region46: #{property_regressors_forward.1} parent=0 // pred_check
    _
  $region47: #{property_regressors_forward.1} parent=0 // pred_check_branch
    %43 = sbr.rel (0) target = $region49
  $region48: #{property_regressors_forward.1} parent=0 // pred_region
    _
  $region49: #{property_regressors_forward.1} parent=0 // pred_fallthru
    _
  // Predicated region
  $region50: #{property_regressors_forward.1} parent=0 // pred_check
    _
  $region51: #{property_regressors_forward.1} parent=0 // pred_check_branch
    %45 = sbr.rel (0) target = $region53
  $region52: #{property_regressors_forward.1} parent=0 // pred_region
    _
  $region53: #{property_regressors_forward.1} parent=0 // pred_fallthru
    _
  // Predicated region
  $region54: #{property_regressors_forward.1} parent=0 // pred_check
    _
  $region55: #{property_regressors_forward.1} parent=0 // pred_check_branch
    %47 = sbr.rel (0) target = $region57
  $region56: #{property_regressors_forward.1} parent=0 // pred_region
    _
  $region57: #{property_regressors_forward.1} parent=0 // pred_fallthru
    _
  // Predicated region
  $region58: #{property_regressors_forward.1} parent=0 // pred_check
    _
  $region59: #{property_regressors_forward.1} parent=0 // pred_check_branch
    %49 = sbr.rel (0) target = $region61
  $region60: #{property_regressors_forward.1} parent=0 // pred_region
    _
  $region61: #{property_regressors_forward.1} parent=0 // pred_fallthru
    _
  %v51 = vld [vmem:[%s0] sm:$0xf]
  %v52 = vld [vmem:[%s0 + $0x4] sm:$0xf]
  %v53 = vld [vmem:[%s4] sm:$0xf]
  %v54 = vld [vmem:[%s4 + $0x4] sm:$0xf]
  %v55 = vld [vmem:[%s4 + $0x8] sm:$0x3]
  %v56 = vld [vmem:[%s1] sm:$0xff]
  %v57 = vld [vmem:[%s1 + $0x8] sm:$0xff]
  %v58 = vld [vmem:[%s1 + $0x10] sm:$0xff]
  %v59 = vld [vmem:[%s1 + $0x18] sm:$0xff]
  %v60 = vld [vmem:[%s1 + $0x20] sm:$0xff]
  %v61 = vld [vmem:[%s1 + $0x28] sm:$0xff]
  %v62 = vld [vmem:[%s1 + $0x30] sm:$0xff]
  %v63 = vld [vmem:[%s1 + $0x38] sm:$0xff]
  %v64 = vld [vmem:[%s1 + $0x40] sm:$0xff]
  %v65 = vld [vmem:[%s1 + $0x48] sm:$0xff]
  %v66 = vld [vmem:[%s1 + $0x50] sm:$0xff]
  %v67 = vld [vmem:[%s1 + $0x58] sm:$0xff]
  %v68 = vld [vmem:[%s1 + $0x60] sm:$0xff]
  %v69 = vld [vmem:[%s1 + $0x68] sm:$0xff]
  %v70 = vld [vmem:[%s1 + $0x70] sm:$0xff]
  %v71 = vld [vmem:[%s1 + $0x78] sm:$0xff]
  %v72 = vld [vmem:[%s5] sm:$0xf]
  %v73 = vld [vmem:[%s5 + $0x4] sm:$0xf]
  %v74 = vld [vmem:[%s5 + $0x8] sm:$0xf]
  %v75 = vld [vmem:[%s5 + $0xc] sm:$0xf]
  %v76 = vld [vmem:[%s5 + $0x10] sm:$0xf]
  %v77 = vld [vmem:[%s5 + $0x14] sm:$0xf]
  %v78 = vld [vmem:[%s5 + $0x18] sm:$0xf]
  %v79 = vld [vmem:[%s5 + $0x1c] sm:$0xf]
  %v80 = vld [vmem:[%s5 + $0x20] sm:$0xf]
  %v81 = vld [vmem:[%s5 + $0x24] sm:$0xf]
  %v82 = vld [vmem:[%s5 + $0x28] sm:$0xf]
  %v83 = vld [vmem:[%s5 + $0x2c] sm:$0xf]
  %v84 = vld [vmem:[%s5 + $0x30] sm:$0xf]
  %v85 = vld [vmem:[%s5 + $0x34] sm:$0xf]
  %v86 = vld [vmem:[%s5 + $0x38] sm:$0xf]
  %v87 = vld [vmem:[%s5 + $0x3c] sm:$0xf]
  %v88 = vld [vmem:[%s5 + $0x40] sm:$0xf]
  %v89 = vld [vmem:[%s5 + $0x44] sm:$0xf]
  %v90 = vld [vmem:[%s5 + $0x48] sm:$0xf]
  %v91 = vld [vmem:[%s5 + $0x4c] sm:$0xf]
  %v92 = vld [vmem:[%s5 + $0x50] sm:$0xf]
  %v93 = vld [vmem:[%s5 + $0x54] sm:$0xf]
  %v94 = vld [vmem:[%s5 + $0x58] sm:$0xf]
  %v95 = vld [vmem:[%s5 + $0x5c] sm:$0xf]
  %v96 = vld [vmem:[%s5 + $0x60] sm:$0xf]
  %v97 = vld [vmem:[%s5 + $0x64] sm:$0xf]
  %v98 = vld [vmem:[%s5 + $0x68] sm:$0xf]
  %v99 = vld [vmem:[%s5 + $0x6c] sm:$0xf]
  %v100 = vld [vmem:[%s5 + $0x70] sm:$0xf]
  %v101 = vld [vmem:[%s5 + $0x74] sm:$0xf]
  %v102 = vld [vmem:[%s5 + $0x78] sm:$0xf]
  %v103 = vld [vmem:[%s5 + $0x7c] sm:$0xf]
  %v104 = vld [vmem:[%s5 + $0x80] sm:$0xf]
  %v105 = vld [vmem:[%s5 + $0x84] sm:$0xf]
  %v106 = vld [vmem:[%s5 + $0x88] sm:$0xf]
  %v107 = vld [vmem:[%s5 + $0x8c] sm:$0xf]
  %v108 = vld [vmem:[%s5 + $0x90] sm:$0xf]
  %v109 = vld [vmem:[%s5 + $0x94] sm:$0xf]
  %v110 = vld [vmem:[%s5 + $0x98] sm:$0xf]
  %v111 = vld [vmem:[%s5 + $0x9c] sm:$0xf]
  %v112 = vld [vmem:[%s5 + $0xa0] sm:$0xf]
  %v113 = vld [vmem:[%s5 + $0xa4] sm:$0xf]
  %v114 = vld [vmem:[%s5 + $0xa8] sm:$0xf]
  %v115 = vld [vmem:[%s5 + $0xac] sm:$0xf]
  %v116 = vld [vmem:[%s5 + $0xb0] sm:$0xf]
  %v117 = vld [vmem:[%s5 + $0xb4] sm:$0xf]
  %v118 = vld [vmem:[%s5 + $0xb8] sm:$0xf]
  %v119 = vld [vmem:[%s5 + $0xbc] sm:$0xf]
  %v120 = vld [vmem:[%s5 + $0xc0] sm:$0xf]
  %v121 = vld [vmem:[%s5 + $0xc4] sm:$0xf]
  %v122 = vld [vmem:[%s5 + $0xc8] sm:$0xf]
  %v123 = vld [vmem:[%s5 + $0xcc] sm:$0xf]
  %v124 = vld [vmem:[%s5 + $0xd0] sm:$0xf]
  %v125 = vld [vmem:[%s5 + $0xd4] sm:$0xf]
  %v126 = vld [vmem:[%s5 + $0xd8] sm:$0xf]
  %v127 = vld [vmem:[%s5 + $0xdc] sm:$0xf]
  %v128 = vld [vmem:[%s5 + $0xe0] sm:$0xf]
  %v129 = vld [vmem:[%s5 + $0xe4] sm:$0xf]
  %v130 = vld [vmem:[%s5 + $0xe8] sm:$0xf]
  %v131 = vld [vmem:[%s5 + $0xec] sm:$0xf]
  %v132 = vld [vmem:[%s5 + $0xf0] sm:$0xf]
  %v133 = vld [vmem:[%s5 + $0xf4] sm:$0xf]
  %v134 = vld [vmem:[%s5 + $0xf8] sm:$0xf]
  %v135 = vld [vmem:[%s5 + $0xfc] sm:$0xf]
  %v136 = vld [vmem:[%s5 + $0x100] sm:$0xf]
  %v137 = vld [vmem:[%s5 + $0x104] sm:$0xf]
  %v138 = vld [vmem:[%s5 + $0x108] sm:$0xf]
  %v139 = vld [vmem:[%s5 + $0x10c] sm:$0xf]
  %v140 = vld [vmem:[%s5 + $0x110] sm:$0xf]
  %v141 = vld [vmem:[%s5 + $0x114] sm:$0xf]
  %v142 = vld [vmem:[%s5 + $0x118] sm:$0xf]
  %v143 = vld [vmem:[%s5 + $0x11c] sm:$0xf]
  %v144 = vld [vmem:[%s5 + $0x120] sm:$0xf]
  %v145 = vld [vmem:[%s5 + $0x124] sm:$0xf]
  %v146 = vld [vmem:[%s5 + $0x128] sm:$0xf]
  %v147 = vld [vmem:[%s5 + $0x12c] sm:$0xf]
  %v148 = vld [vmem:[%s5 + $0x130] sm:$0xf]
  %v149 = vld [vmem:[%s5 + $0x134] sm:$0xf]
  %v150 = vld [vmem:[%s5 + $0x138] sm:$0xf]
  %v151 = vld [vmem:[%s5 + $0x13c] sm:$0xf]
  %v152 = vld [vmem:[%s5 + $0x140] sm:$0xf]
  %v153 = vld [vmem:[%s5 + $0x144] sm:$0xf]
  %v154 = vld [vmem:[%s5 + $0x148] sm:$0xf]
  %v155 = vld [vmem:[%s5 + $0x14c] sm:$0xf]
  %v156 = vld [vmem:[%s5 + $0x150] sm:$0xf]
  %v157 = vld [vmem:[%s5 + $0x154] sm:$0xf]
  %v158 = vld [vmem:[%s5 + $0x158] sm:$0xf]
  %v159 = vld [vmem:[%s5 + $0x15c] sm:$0xf]
  %v160 = vld [vmem:[%s5 + $0x160] sm:$0xf]
  %v161 = vld [vmem:[%s5 + $0x164] sm:$0xf]
  %v162 = vld [vmem:[%s5 + $0x168] sm:$0xf]
  %v163 = vld [vmem:[%s5 + $0x16c] sm:$0xf]
  %v164 = vld [vmem:[%s5 + $0x170] sm:$0xf]
  %v165 = vld [vmem:[%s5 + $0x174] sm:$0xf]
  %v166 = vld [vmem:[%s5 + $0x178] sm:$0xf]
  %v167 = vld [vmem:[%s5 + $0x17c] sm:$0xf]
  %v168 = vld [vmem:[%s5 + $0x180] sm:$0xf]
  %v169 = vld [vmem:[%s5 + $0x184] sm:$0xf]
  %v170 = vld [vmem:[%s5 + $0x188] sm:$0xf]
  %v171 = vld [vmem:[%s5 + $0x18c] sm:$0xf]
  %v172 = vld [vmem:[%s5 + $0x190] sm:$0xf]
  %v173 = vld [vmem:[%s5 + $0x194] sm:$0xf]
  %v174 = vld [vmem:[%s5 + $0x198] sm:$0xf]
  %v175 = vld [vmem:[%s5 + $0x19c] sm:$0xf]
  %v176 = vld [vmem:[%s5 + $0x1a0] sm:$0xf]
  %v177 = vld [vmem:[%s5 + $0x1a4] sm:$0xf]
  %v178 = vld [vmem:[%s5 + $0x1a8] sm:$0xf]
  %v179 = vld [vmem:[%s5 + $0x1ac] sm:$0xf]
  %v180 = vld [vmem:[%s5 + $0x1b0] sm:$0xf]
  %v181 = vld [vmem:[%s5 + $0x1b4] sm:$0xf]
  %v182 = vld [vmem:[%s5 + $0x1b8] sm:$0xf]
  %v183 = vld [vmem:[%s5 + $0x1bc] sm:$0xf]
  %v184 = vld [vmem:[%s5 + $0x1c0] sm:$0xf]
  %v185 = vld [vmem:[%s5 + $0x1c4] sm:$0xf]
  %v186 = vld [vmem:[%s5 + $0x1c8] sm:$0xf]
  %v187 = vld [vmem:[%s5 + $0x1cc] sm:$0xf]
  %v188 = vld [vmem:[%s5 + $0x1d0] sm:$0xf]
  %v189 = vld [vmem:[%s5 + $0x1d4] sm:$0xf]
  %v190 = vld [vmem:[%s5 + $0x1d8] sm:$0xf]
  %v191 = vld [vmem:[%s5 + $0x1dc] sm:$0xf]
  %v192 = vld [vmem:[%s5 + $0x1e0] sm:$0xf]
  %v193 = vld [vmem:[%s5 + $0x1e4] sm:$0xf]
  %v194 = vld [vmem:[%s5 + $0x1e8] sm:$0xf]
  %v195 = vld [vmem:[%s5 + $0x1ec] sm:$0xf]
  %v196 = vld [vmem:[%s5 + $0x1f0] sm:$0xf]
  %v197 = vld [vmem:[%s5 + $0x1f4] sm:$0xf]
  %v198 = vld [vmem:[%s5 + $0x1f8] sm:$0xf]
  %v199 = vld [vmem:[%s5 + $0x1fc] sm:$0xf]
  %v200 = vld [vmem:[%s5 + $0x200] sm:$0xf]
  %v201 = vld [vmem:[%s5 + $0x204] sm:$0xf]
  %v202 = vld [vmem:[%s5 + $0x208] sm:$0xf]
  %v203 = vld [vmem:[%s5 + $0x20c] sm:$0xf]
  %v204 = vld [vmem:[%s5 + $0x210] sm:$0xf]
  %v205 = vld [vmem:[%s5 + $0x214] sm:$0xf]
  %v206 = vld [vmem:[%s5 + $0x218] sm:$0xf]
  %v207 = vld [vmem:[%s5 + $0x21c] sm:$0xf]
  %v208 = vld [vmem:[%s5 + $0x220] sm:$0xf]
  %v209 = vld [vmem:[%s5 + $0x224] sm:$0xf]
  %v210 = vld [vmem:[%s5 + $0x228] sm:$0xf]
  %v211 = vld [vmem:[%s5 + $0x22c] sm:$0xf]
  %v212 = vld [vmem:[%s5 + $0x230] sm:$0xf]
  %v213 = vld [vmem:[%s5 + $0x234] sm:$0xf]
  %v214 = vld [vmem:[%s5 + $0x238] sm:$0xf]
  %v215 = vld [vmem:[%s5 + $0x23c] sm:$0xf]
  %v216 = vld [vmem:[%s5 + $0x240] sm:$0xf]
  %v217 = vld [vmem:[%s5 + $0x244] sm:$0xf]
  %v218 = vld [vmem:[%s5 + $0x248] sm:$0xf]
  %v219 = vld [vmem:[%s5 + $0x24c] sm:$0xf]
  %v220 = vld [vmem:[%s5 + $0x250] sm:$0xf]
  %v221 = vld [vmem:[%s5 + $0x254] sm:$0xf]
  %v222 = vld [vmem:[%s5 + $0x258] sm:$0xf]
  %v223 = vld [vmem:[%s5 + $0x25c] sm:$0xf]
  %v224 = vld [vmem:[%s5 + $0x260] sm:$0xf]
  %v225 = vld [vmem:[%s5 + $0x264] sm:$0xf]
  %v226 = vld [vmem:[%s5 + $0x268] sm:$0xf]
  %v227 = vld [vmem:[%s5 + $0x26c] sm:$0xf]
  %v228 = vld [vmem:[%s5 + $0x270] sm:$0xf]
  %v229 = vld [vmem:[%s5 + $0x274] sm:$0xf]
  %v230 = vld [vmem:[%s5 + $0x278] sm:$0xf]
  %v231 = vld [vmem:[%s5 + $0x27c] sm:$0xf]
  %v232 = vld [vmem:[%s5 + $0x280] sm:$0xf]
  %v233 = vld [vmem:[%s5 + $0x284] sm:$0xf]
  %v234 = vld [vmem:[%s5 + $0x288] sm:$0xf]
  %v235 = vld [vmem:[%s5 + $0x28c] sm:$0xf]
  %v236 = vld [vmem:[%s5 + $0x290] sm:$0xf]
  %v237 = vld [vmem:[%s5 + $0x294] sm:$0xf]
  %v238 = vld [vmem:[%s5 + $0x298] sm:$0xf]
  %v239 = vld [vmem:[%s5 + $0x29c] sm:$0xf]
  %v240 = vld [vmem:[%s5 + $0x2a0] sm:$0xf]
  %v241 = vld [vmem:[%s5 + $0x2a4] sm:$0xf]
  %v242 = vld [vmem:[%s5 + $0x2a8] sm:$0xf]
  %v243 = vld [vmem:[%s5 + $0x2ac] sm:$0xf]
  %v244 = vld [vmem:[%s5 + $0x2b0] sm:$0xf]
  %v245 = vld [vmem:[%s5 + $0x2b4] sm:$0xf]
  %v246 = vld [vmem:[%s5 + $0x2b8] sm:$0xf]
  %v247 = vld [vmem:[%s5 + $0x2bc] sm:$0xf]
  %v248 = vld [vmem:[%s5 + $0x2c0] sm:$0xf]
  %v249 = vld [vmem:[%s5 + $0x2c4] sm:$0xf]
  %v250 = vld [vmem:[%s5 + $0x2c8] sm:$0xf]
  %v251 = vld [vmem:[%s5 + $0x2cc] sm:$0xf]
  %v252 = vld [vmem:[%s5 + $0x2d0] sm:$0xf]
  %v253 = vld [vmem:[%s5 + $0x2d4] sm:$0xf]
  %v254 = vld [vmem:[%s5 + $0x2d8] sm:$0xf]
  %v255 = vld [vmem:[%s5 + $0x2dc] sm:$0xf]
  %v256 = vld [vmem:[%s5 + $0x2e0] sm:$0xf]
  %v257 = vld [vmem:[%s5 + $0x2e4] sm:$0xf]
  %v258 = vld [vmem:[%s5 + $0x2e8] sm:$0xf]
  %v259 = vld [vmem:[%s5 + $0x2ec] sm:$0xf]
  %v260 = vld [vmem:[%s5 + $0x2f0] sm:$0xf]
  %v261 = vld [vmem:[%s5 + $0x2f4] sm:$0xf]
  %v262 = vld [vmem:[%s5 + $0x2f8] sm:$0xf]
  %v263 = vld [vmem:[%s5 + $0x2fc] sm:$0xf]
  %v264 = vld [vmem:[%s5 + $0x300] sm:$0xf]
  %v265 = vld [vmem:[%s5 + $0x304] sm:$0xf]
  %v266 = vld [vmem:[%s5 + $0x308] sm:$0xf]
  %v267 = vld [vmem:[%s5 + $0x30c] sm:$0xf]
  %v268 = vld [vmem:[%s5 + $0x310] sm:$0xf]
  %v269 = vld [vmem:[%s5 + $0x314] sm:$0xf]
  %v270 = vld [vmem:[%s5 + $0x318] sm:$0xf]
  %v271 = vld [vmem:[%s5 + $0x31c] sm:$0xf]
  %v272 = vld [vmem:[%s5 + $0x320] sm:$0xf]
  %v273 = vld [vmem:[%s5 + $0x324] sm:$0xf]
  %v274 = vld [vmem:[%s5 + $0x328] sm:$0xf]
  %v275 = vld [vmem:[%s5 + $0x32c] sm:$0xf]
  %v276 = vld [vmem:[%s5 + $0x330] sm:$0xf]
  %v277 = vld [vmem:[%s5 + $0x334] sm:$0xf]
  %v278 = vld [vmem:[%s5 + $0x338] sm:$0xf]
  %v279 = vld [vmem:[%s5 + $0x33c] sm:$0xf]
  %v280 = vld [vmem:[%s5 + $0x340] sm:$0xf]
  %v281 = vld [vmem:[%s5 + $0x344] sm:$0xf]
  %v282 = vld [vmem:[%s5 + $0x348] sm:$0xf]
  %v283 = vld [vmem:[%s5 + $0x34c] sm:$0xf]
  %v284 = vld [vmem:[%s5 + $0x350] sm:$0xf]
  %v285 = vld [vmem:[%s5 + $0x354] sm:$0xf]
  %v286 = vld [vmem:[%s5 + $0x358] sm:$0xf]
  %v287 = vld [vmem:[%s5 + $0x35c] sm:$0xf]
  %v288 = vld [vmem:[%s5 + $0x360] sm:$0xf]
  %v289 = vld [vmem:[%s5 + $0x364] sm:$0xf]
  %v290 = vld [vmem:[%s5 + $0x368] sm:$0xf]
  %v291 = vld [vmem:[%s5 + $0x36c] sm:$0xf]
  %v292 = vld [vmem:[%s5 + $0x370] sm:$0xf]
  %v293 = vld [vmem:[%s5 + $0x374] sm:$0xf]
  %v294 = vld [vmem:[%s5 + $0x378] sm:$0xf]
  %v295 = vld [vmem:[%s5 + $0x37c] sm:$0xf]
  %v296 = vld [vmem:[%s5 + $0x380] sm:$0xf]
  %v297 = vld [vmem:[%s5 + $0x384] sm:$0xf]
  %v298 = vld [vmem:[%s5 + $0x388] sm:$0xf]
  %v299 = vld [vmem:[%s5 + $0x38c] sm:$0xf]
  %v300 = vld [vmem:[%s5 + $0x390] sm:$0xf]
  %v301 = vld [vmem:[%s5 + $0x394] sm:$0xf]
  %v302 = vld [vmem:[%s5 + $0x398] sm:$0xf]
  %v303 = vld [vmem:[%s5 + $0x39c] sm:$0xf]
  %v304 = vld [vmem:[%s5 + $0x3a0] sm:$0xf]
  %v305 = vld [vmem:[%s5 + $0x3a4] sm:$0xf]
  %v306 = vld [vmem:[%s5 + $0x3a8] sm:$0xf]
  %v307 = vld [vmem:[%s5 + $0x3ac] sm:$0xf]
  %v308 = vld [vmem:[%s5 + $0x3b0] sm:$0xf]
  %v309 = vld [vmem:[%s5 + $0x3b4] sm:$0xf]
  %v310 = vld [vmem:[%s5 + $0x3b8] sm:$0xf]
  %v311 = vld [vmem:[%s5 + $0x3bc] sm:$0xf]
  %v312 = vld [vmem:[%s5 + $0x3c0] sm:$0xf]
  %v313 = vld [vmem:[%s5 + $0x3c4] sm:$0xf]
  %v314 = vld [vmem:[%s5 + $0x3c8] sm:$0xf]
  %v315 = vld [vmem:[%s5 + $0x3cc] sm:$0xf]
  %v316 = vld [vmem:[%s5 + $0x3d0] sm:$0xf]
  %v317 = vld [vmem:[%s5 + $0x3d4] sm:$0xf]
  %v318 = vld [vmem:[%s5 + $0x3d8] sm:$0xf]
  %v319 = vld [vmem:[%s5 + $0x3dc] sm:$0xf]
  %v320 = vld [vmem:[%s5 + $0x3e0] sm:$0xf]
  %v321 = vld [vmem:[%s5 + $0x3e4] sm:$0xf]
  %v322 = vld [vmem:[%s5 + $0x3e8] sm:$0xf]
  %v323 = vld [vmem:[%s5 + $0x3ec] sm:$0xf]
  %v324 = vld [vmem:[%s5 + $0x3f0] sm:$0xf]
  %v325 = vld [vmem:[%s5 + $0x3f4] sm:$0xf]
  %v326 = vld [vmem:[%s5 + $0x3f8] sm:$0xf]
  %v327 = vld [vmem:[%s5 + $0x3fc] sm:$0xf]
  %v344 = vunpack.c.l.b16 %v56
  %v345 = vunpack.c.h.b16 %v56
  %v346 = vunpack.c.l.b16 %v57
  %v347 = vunpack.c.h.b16 %v57
  %v348 = vunpack.c.l.b16 %v58
  %v349 = vunpack.c.h.b16 %v58
  %v350 = vunpack.c.l.b16 %v59
  %v351 = vunpack.c.h.b16 %v59
  %v352 = vunpack.c.l.b16 %v60
  %v353 = vunpack.c.h.b16 %v60
  %v354 = vunpack.c.l.b16 %v61
  %v355 = vunpack.c.h.b16 %v61
  %v356 = vunpack.c.l.b16 %v62
  %v357 = vunpack.c.h.b16 %v62
  %v358 = vunpack.c.l.b16 %v63
  %v359 = vunpack.c.h.b16 %v63
  %v360 = vunpack.c.l.b16 %v64
  %v361 = vunpack.c.h.b16 %v64
  %v362 = vunpack.c.l.b16 %v65
  %v363 = vunpack.c.h.b16 %v65
  %v364 = vunpack.c.l.b16 %v66
  %v365 = vunpack.c.h.b16 %v66
  %v366 = vunpack.c.l.b16 %v67
  %v367 = vunpack.c.h.b16 %v67
  %v368 = vunpack.c.l.b16 %v68
  %v369 = vunpack.c.h.b16 %v68
  %v370 = vunpack.c.l.b16 %v69
  %v371 = vunpack.c.h.b16 %v69
  %v372 = vunpack.c.l.b16 %v70
  %v373 = vunpack.c.h.b16 %v70
  %v374 = vunpack.c.l.b16 %v71
  %v375 = vunpack.c.h.b16 %v71
  %v376 = vpack.c.b16 %v360, %v344
  %v377 = vpack.c.b16 %v361, %v345
  %v378 = vpack.c.b16 %v362, %v346
  %v379 = vpack.c.b16 %v363, %v347
  %v380 = vpack.c.b16 %v364, %v348
  %v381 = vpack.c.b16 %v365, %v349
  %v382 = vpack.c.b16 %v366, %v350
  %v383 = vpack.c.b16 %v367, %v351
  %v384 = vpack.c.b16 %v368, %v352
  %v385 = vpack.c.b16 %v369, %v353
  %v386 = vpack.c.b16 %v370, %v354
  %v387 = vpack.c.b16 %v371, %v355
  %v388 = vpack.c.b16 %v372, %v356
  %v389 = vpack.c.b16 %v373, %v357
  %v390 = vpack.c.b16 %v374, %v358
  %v391 = vpack.c.b16 %v375, %v359
  %v664 = vunpack.c.l.b16 %v72
  %v665 = vunpack.c.l.b16 %v73
  %v666 = vunpack.c.l.b16 %v74
  %v667 = vunpack.c.l.b16 %v75
  %v668 = vunpack.c.l.b16 %v76
  %v669 = vunpack.c.l.b16 %v77
  %v670 = vunpack.c.l.b16 %v78
  %v671 = vunpack.c.l.b16 %v79
  %v672 = vunpack.c.l.b16 %v80
  %v673 = vunpack.c.l.b16 %v81
  %v674 = vunpack.c.l.b16 %v82
  %v675 = vunpack.c.l.b16 %v83
  %v676 = vunpack.c.l.b16 %v84
  %v677 = vunpack.c.l.b16 %v85
  %v678 = vunpack.c.l.b16 %v86
  %v679 = vunpack.c.l.b16 %v87
  %v680 = vunpack.c.l.b16 %v88
  %v681 = vunpack.c.l.b16 %v89
  %v682 = vunpack.c.l.b16 %v90
  %v683 = vunpack.c.l.b16 %v91
  %v684 = vunpack.c.l.b16 %v92
  %v685 = vunpack.c.l.b16 %v93
  %v686 = vunpack.c.l.b16 %v94
  %v687 = vunpack.c.l.b16 %v95
  %v688 = vunpack.c.l.b16 %v96
  %v689 = vunpack.c.l.b16 %v97
  %v690 = vunpack.c.l.b16 %v98
  %v691 = vunpack.c.l.b16 %v99
  %v692 = vunpack.c.l.b16 %v100
  %v693 = vunpack.c.l.b16 %v101
  %v694 = vunpack.c.l.b16 %v102
  %v695 = vunpack.c.l.b16 %v103
  %v696 = vunpack.c.l.b16 %v104
  %v697 = vunpack.c.l.b16 %v105
  %v698 = vunpack.c.l.b16 %v106
  %v699 = vunpack.c.l.b16 %v107
  %v700 = vunpack.c.l.b16 %v108
  %v701 = vunpack.c.l.b16 %v109
  %v702 = vunpack.c.l.b16 %v110
  %v703 = vunpack.c.l.b16 %v111
  %v704 = vunpack.c.l.b16 %v112
  %v705 = vunpack.c.l.b16 %v113
  %v706 = vunpack.c.l.b16 %v114
  %v707 = vunpack.c.l.b16 %v115
  %v708 = vunpack.c.l.b16 %v116
  %v709 = vunpack.c.l.b16 %v117
  %v710 = vunpack.c.l.b16 %v118
  %v711 = vunpack.c.l.b16 %v119
  %v712 = vunpack.c.l.b16 %v120
  %v713 = vunpack.c.l.b16 %v121
  %v714 = vunpack.c.l.b16 %v122
  %v715 = vunpack.c.l.b16 %v123
  %v716 = vunpack.c.l.b16 %v124
  %v717 = vunpack.c.l.b16 %v125
  %v718 = vunpack.c.l.b16 %v126
  %v719 = vunpack.c.l.b16 %v127
  %v720 = vunpack.c.l.b16 %v128
  %v721 = vunpack.c.l.b16 %v129
  %v722 = vunpack.c.l.b16 %v130
  %v723 = vunpack.c.l.b16 %v131
  %v724 = vunpack.c.l.b16 %v132
  %v725 = vunpack.c.l.b16 %v133
  %v726 = vunpack.c.l.b16 %v134
  %v727 = vunpack.c.l.b16 %v135
  %v728 = vunpack.c.l.b16 %v136
  %v729 = vunpack.c.l.b16 %v137
  %v730 = vunpack.c.l.b16 %v138
  %v731 = vunpack.c.l.b16 %v139
  %v732 = vunpack.c.l.b16 %v140
  %v733 = vunpack.c.l.b16 %v141
  %v734 = vunpack.c.l.b16 %v142
  %v735 = vunpack.c.l.b16 %v143
  %v736 = vunpack.c.l.b16 %v144
  %v737 = vunpack.c.l.b16 %v145
  %v738 = vunpack.c.l.b16 %v146
  %v739 = vunpack.c.l.b16 %v147
  %v740 = vunpack.c.l.b16 %v148
  %v741 = vunpack.c.l.b16 %v149
  %v742 = vunpack.c.l.b16 %v150
  %v743 = vunpack.c.l.b16 %v151
  %v744 = vunpack.c.l.b16 %v152
  %v745 = vunpack.c.l.b16 %v153
  %v746 = vunpack.c.l.b16 %v154
  %v747 = vunpack.c.l.b16 %v155
  %v748 = vunpack.c.l.b16 %v156
  %v749 = vunpack.c.l.b16 %v157
  %v750 = vunpack.c.l.b16 %v158
  %v751 = vunpack.c.l.b16 %v159
  %v752 = vunpack.c.l.b16 %v160
  %v753 = vunpack.c.l.b16 %v161
  %v754 = vunpack.c.l.b16 %v162
  %v755 = vunpack.c.l.b16 %v163
  %v756 = vunpack.c.l.b16 %v164
  %v757 = vunpack.c.l.b16 %v165
  %v758 = vunpack.c.l.b16 %v166
  %v759 = vunpack.c.l.b16 %v167
  %v760 = vunpack.c.l.b16 %v168
  %v761 = vunpack.c.l.b16 %v169
  %v762 = vunpack.c.l.b16 %v170
  %v763 = vunpack.c.l.b16 %v171
  %v764 = vunpack.c.l.b16 %v172
  %v765 = vunpack.c.l.b16 %v173
  %v766 = vunpack.c.l.b16 %v174
  %v767 = vunpack.c.l.b16 %v175
  %v768 = vunpack.c.l.b16 %v176
  %v769 = vunpack.c.l.b16 %v177
  %v770 = vunpack.c.l.b16 %v178
  %v771 = vunpack.c.l.b16 %v179
  %v772 = vunpack.c.l.b16 %v180
  %v773 = vunpack.c.l.b16 %v181
  %v774 = vunpack.c.l.b16 %v182
  %v775 = vunpack.c.l.b16 %v183
  %v776 = vunpack.c.l.b16 %v184
  %v777 = vunpack.c.l.b16 %v185
  %v778 = vunpack.c.l.b16 %v186
  %v779 = vunpack.c.l.b16 %v187
  %v780 = vunpack.c.l.b16 %v188
  %v781 = vunpack.c.l.b16 %v189
  %v782 = vunpack.c.l.b16 %v190
  %v783 = vunpack.c.l.b16 %v191
  %v784 = vunpack.c.l.b16 %v192
  %v785 = vunpack.c.l.b16 %v193
  %v786 = vunpack.c.l.b16 %v194
  %v787 = vunpack.c.l.b16 %v195
  %v788 = vunpack.c.l.b16 %v196
  %v789 = vunpack.c.l.b16 %v197
  %v790 = vunpack.c.l.b16 %v198
  %v791 = vunpack.c.l.b16 %v199
  %v792 = vunpack.c.l.b16 %v200
  %v793 = vunpack.c.l.b16 %v201
  %v794 = vunpack.c.l.b16 %v202
  %v795 = vunpack.c.l.b16 %v203
  %v796 = vunpack.c.l.b16 %v204
  %v797 = vunpack.c.l.b16 %v205
  %v798 = vunpack.c.l.b16 %v206
  %v799 = vunpack.c.l.b16 %v207
  %v800 = vunpack.c.l.b16 %v208
  %v801 = vunpack.c.l.b16 %v209
  %v802 = vunpack.c.l.b16 %v210
  %v803 = vunpack.c.l.b16 %v211
  %v804 = vunpack.c.l.b16 %v212
  %v805 = vunpack.c.l.b16 %v213
  %v806 = vunpack.c.l.b16 %v214
  %v807 = vunpack.c.l.b16 %v215
  %v808 = vunpack.c.l.b16 %v216
  %v809 = vunpack.c.l.b16 %v217
  %v810 = vunpack.c.l.b16 %v218
  %v811 = vunpack.c.l.b16 %v219
  %v812 = vunpack.c.l.b16 %v220
  %v813 = vunpack.c.l.b16 %v221
  %v814 = vunpack.c.l.b16 %v222
  %v815 = vunpack.c.l.b16 %v223
  %v816 = vunpack.c.l.b16 %v224
  %v817 = vunpack.c.l.b16 %v225
  %v818 = vunpack.c.l.b16 %v226
  %v819 = vunpack.c.l.b16 %v227
  %v820 = vunpack.c.l.b16 %v228
  %v821 = vunpack.c.l.b16 %v229
  %v822 = vunpack.c.l.b16 %v230
  %v823 = vunpack.c.l.b16 %v231
  %v824 = vunpack.c.l.b16 %v232
  %v825 = vunpack.c.l.b16 %v233
  %v826 = vunpack.c.l.b16 %v234
  %v827 = vunpack.c.l.b16 %v235
  %v828 = vunpack.c.l.b16 %v236
  %v829 = vunpack.c.l.b16 %v237
  %v830 = vunpack.c.l.b16 %v238
  %v831 = vunpack.c.l.b16 %v239
  %v832 = vunpack.c.l.b16 %v240
  %v833 = vunpack.c.l.b16 %v241
  %v834 = vunpack.c.l.b16 %v242
  %v835 = vunpack.c.l.b16 %v243
  %v836 = vunpack.c.l.b16 %v244
  %v837 = vunpack.c.l.b16 %v245
  %v838 = vunpack.c.l.b16 %v246
  %v839 = vunpack.c.l.b16 %v247
  %v840 = vunpack.c.l.b16 %v248
  %v841 = vunpack.c.l.b16 %v249
  %v842 = vunpack.c.l.b16 %v250
  %v843 = vunpack.c.l.b16 %v251
  %v844 = vunpack.c.l.b16 %v252
  %v845 = vunpack.c.l.b16 %v253
  %v846 = vunpack.c.l.b16 %v254
  %v847 = vunpack.c.l.b16 %v255
  %v848 = vunpack.c.l.b16 %v256
  %v849 = vunpack.c.l.b16 %v257
  %v850 = vunpack.c.l.b16 %v258
  %v851 = vunpack.c.l.b16 %v259
  %v852 = vunpack.c.l.b16 %v260
  %v853 = vunpack.c.l.b16 %v261
  %v854 = vunpack.c.l.b16 %v262
  %v855 = vunpack.c.l.b16 %v263
  %v856 = vunpack.c.l.b16 %v264
  %v857 = vunpack.c.l.b16 %v265
  %v858 = vunpack.c.l.b16 %v266
  %v859 = vunpack.c.l.b16 %v267
  %v860 = vunpack.c.l.b16 %v268
  %v861 = vunpack.c.l.b16 %v269
  %v862 = vunpack.c.l.b16 %v270
  %v863 = vunpack.c.l.b16 %v271
  %v864 = vunpack.c.l.b16 %v272
  %v865 = vunpack.c.l.b16 %v273
  %v866 = vunpack.c.l.b16 %v274
  %v867 = vunpack.c.l.b16 %v275
  %v868 = vunpack.c.l.b16 %v276
  %v869 = vunpack.c.l.b16 %v277
  %v870 = vunpack.c.l.b16 %v278
  %v871 = vunpack.c.l.b16 %v279
  %v872 = vunpack.c.l.b16 %v280
  %v873 = vunpack.c.l.b16 %v281
  %v874 = vunpack.c.l.b16 %v282
  %v875 = vunpack.c.l.b16 %v283
  %v876 = vunpack.c.l.b16 %v284
  %v877 = vunpack.c.l.b16 %v285
  %v878 = vunpack.c.l.b16 %v286
  %v879 = vunpack.c.l.b16 %v287
  %v880 = vunpack.c.l.b16 %v288
  %v881 = vunpack.c.l.b16 %v289
  %v882 = vunpack.c.l.b16 %v290
  %v883 = vunpack.c.l.b16 %v291
  %v884 = vunpack.c.l.b16 %v292
  %v885 = vunpack.c.l.b16 %v293
  %v886 = vunpack.c.l.b16 %v294
  %v887 = vunpack.c.l.b16 %v295
  %v888 = vunpack.c.l.b16 %v296
  %v889 = vunpack.c.l.b16 %v297
  %v890 = vunpack.c.l.b16 %v298
  %v891 = vunpack.c.l.b16 %v299
  %v892 = vunpack.c.l.b16 %v300
  %v893 = vunpack.c.l.b16 %v301
  %v894 = vunpack.c.l.b16 %v302
  %v895 = vunpack.c.l.b16 %v303
  %v896 = vunpack.c.l.b16 %v304
  %v897 = vunpack.c.l.b16 %v305
  %v898 = vunpack.c.l.b16 %v306
  %v899 = vunpack.c.l.b16 %v307
  %v900 = vunpack.c.l.b16 %v308
  %v901 = vunpack.c.l.b16 %v309
  %v902 = vunpack.c.l.b16 %v310
  %v903 = vunpack.c.l.b16 %v311
  %v904 = vunpack.c.l.b16 %v312
  %v905 = vunpack.c.l.b16 %v313
  %v906 = vunpack.c.l.b16 %v314
  %v907 = vunpack.c.l.b16 %v315
  %v908 = vunpack.c.l.b16 %v316
  %v909 = vunpack.c.l.b16 %v317
  %v910 = vunpack.c.l.b16 %v318
  %v911 = vunpack.c.l.b16 %v319
  %v912 = vunpack.c.l.b16 %v320
  %v913 = vunpack.c.l.b16 %v321
  %v914 = vunpack.c.l.b16 %v322
  %v915 = vunpack.c.l.b16 %v323
  %v916 = vunpack.c.l.b16 %v324
  %v917 = vunpack.c.l.b16 %v325
  %v918 = vunpack.c.l.b16 %v326
  %v919 = vunpack.c.l.b16 %v327
  %v920 = vpack.c.b16 %v665, %v664
  %v921 = vpack.c.b16 %v667, %v666
  %v922 = vpack.c.b16 %v669, %v668
  %v923 = vpack.c.b16 %v671, %v670
  %v924 = vpack.c.b16 %v673, %v672
  %v925 = vpack.c.b16 %v675, %v674
  %v926 = vpack.c.b16 %v677, %v676
  %v927 = vpack.c.b16 %v679, %v678
  %v928 = vpack.c.b16 %v681, %v680
  %v929 = vpack.c.b16 %v683, %v682
  %v930 = vpack.c.b16 %v685, %v684
  %v931 = vpack.c.b16 %v687, %v686
  %v932 = vpack.c.b16 %v689, %v688
  %v933 = vpack.c.b16 %v691, %v690
  %v934 = vpack.c.b16 %v693, %v692
  %v935 = vpack.c.b16 %v695, %v694
  %v936 = vpack.c.b16 %v697, %v696
  %v937 = vpack.c.b16 %v699, %v698
  %v938 = vpack.c.b16 %v701, %v700
  %v939 = vpack.c.b16 %v703, %v702
  %v940 = vpack.c.b16 %v705, %v704
  %v941 = vpack.c.b16 %v707, %v706
  %v942 = vpack.c.b16 %v709, %v708
  %v943 = vpack.c.b16 %v711, %v710
  %v944 = vpack.c.b16 %v713, %v712
  %v945 = vpack.c.b16 %v715, %v714
  %v946 = vpack.c.b16 %v717, %v716
  %v947 = vpack.c.b16 %v719, %v718
  %v948 = vpack.c.b16 %v721, %v720
  %v949 = vpack.c.b16 %v723, %v722
  %v950 = vpack.c.b16 %v725, %v724
  %v951 = vpack.c.b16 %v727, %v726
  %v952 = vpack.c.b16 %v729, %v728
  %v953 = vpack.c.b16 %v731, %v730
  %v954 = vpack.c.b16 %v733, %v732
  %v955 = vpack.c.b16 %v735, %v734
  %v956 = vpack.c.b16 %v737, %v736
  %v957 = vpack.c.b16 %v739, %v738
  %v958 = vpack.c.b16 %v741, %v740
  %v959 = vpack.c.b16 %v743, %v742
  %v960 = vpack.c.b16 %v745, %v744
  %v961 = vpack.c.b16 %v747, %v746
  %v962 = vpack.c.b16 %v749, %v748
  %v963 = vpack.c.b16 %v751, %v750
  %v964 = vpack.c.b16 %v753, %v752
  %v965 = vpack.c.b16 %v755, %v754
  %v966 = vpack.c.b16 %v757, %v756
  %v967 = vpack.c.b16 %v759, %v758
  %v968 = vpack.c.b16 %v761, %v760
  %v969 = vpack.c.b16 %v763, %v762
  %v970 = vpack.c.b16 %v765, %v764
  %v971 = vpack.c.b16 %v767, %v766
  %v972 = vpack.c.b16 %v769, %v768
  %v973 = vpack.c.b16 %v771, %v770
  %v974 = vpack.c.b16 %v773, %v772
  %v975 = vpack.c.b16 %v775, %v774
  %v976 = vpack.c.b16 %v777, %v776
  %v977 = vpack.c.b16 %v779, %v778
  %v978 = vpack.c.b16 %v781, %v780
  %v979 = vpack.c.b16 %v783, %v782
  %v980 = vpack.c.b16 %v785, %v784
  %v981 = vpack.c.b16 %v787, %v786
  %v982 = vpack.c.b16 %v789, %v788
  %v983 = vpack.c.b16 %v791, %v790
  %v984 = vpack.c.b16 %v793, %v792
  %v985 = vpack.c.b16 %v795, %v794
  %v986 = vpack.c.b16 %v797, %v796
  %v987 = vpack.c.b16 %v799, %v798
  %v988 = vpack.c.b16 %v801, %v800
  %v989 = vpack.c.b16 %v803, %v802
  %v990 = vpack.c.b16 %v805, %v804
  %v991 = vpack.c.b16 %v807, %v806
  %v992 = vpack.c.b16 %v809, %v808
  %v993 = vpack.c.b16 %v811, %v810
  %v994 = vpack.c.b16 %v813, %v812
  %v995 = vpack.c.b16 %v815, %v814
  %v996 = vpack.c.b16 %v817, %v816
  %v997 = vpack.c.b16 %v819, %v818
  %v998 = vpack.c.b16 %v821, %v820
  %v999 = vpack.c.b16 %v823, %v822
  %v1000 = vpack.c.b16 %v825, %v824
  %v1001 = vpack.c.b16 %v827, %v826
  %v1002 = vpack.c.b16 %v829, %v828
  %v1003 = vpack.c.b16 %v831, %v830
  %v1004 = vpack.c.b16 %v833, %v832
  %v1005 = vpack.c.b16 %v835, %v834
  %v1006 = vpack.c.b16 %v837, %v836
  %v1007 = vpack.c.b16 %v839, %v838
  %v1008 = vpack.c.b16 %v841, %v840
  %v1009 = vpack.c.b16 %v843, %v842
  %v1010 = vpack.c.b16 %v845, %v844
  %v1011 = vpack.c.b16 %v847, %v846
  %v1012 = vpack.c.b16 %v849, %v848
  %v1013 = vpack.c.b16 %v851, %v850
  %v1014 = vpack.c.b16 %v853, %v852
  %v1015 = vpack.c.b16 %v855, %v854
  %v1016 = vpack.c.b16 %v857, %v856
  %v1017 = vpack.c.b16 %v859, %v858
  %v1018 = vpack.c.b16 %v861, %v860
  %v1019 = vpack.c.b16 %v863, %v862
  %v1020 = vpack.c.b16 %v865, %v864
  %v1021 = vpack.c.b16 %v867, %v866
  %v1022 = vpack.c.b16 %v869, %v868
  %v1023 = vpack.c.b16 %v871, %v870
  %v1024 = vpack.c.b16 %v873, %v872
  %v1025 = vpack.c.b16 %v875, %v874
  %v1026 = vpack.c.b16 %v877, %v876
  %v1027 = vpack.c.b16 %v879, %v878
  %v1028 = vpack.c.b16 %v881, %v880
  %v1029 = vpack.c.b16 %v883, %v882
  %v1030 = vpack.c.b16 %v885, %v884
  %v1031 = vpack.c.b16 %v887, %v886
  %v1032 = vpack.c.b16 %v889, %v888
  %v1033 = vpack.c.b16 %v891, %v890
  %v1034 = vpack.c.b16 %v893, %v892
  %v1035 = vpack.c.b16 %v895, %v894
  %v1036 = vpack.c.b16 %v897, %v896
  %v1037 = vpack.c.b16 %v899, %v898
  %v1038 = vpack.c.b16 %v901, %v900
  %v1039 = vpack.c.b16 %v903, %v902
  %v1040 = vpack.c.b16 %v905, %v904
  %v1041 = vpack.c.b16 %v907, %v906
  %v1042 = vpack.c.b16 %v909, %v908
  %v1043 = vpack.c.b16 %v911, %v910
  %v1044 = vpack.c.b16 %v913, %v912
  %v1045 = vpack.c.b16 %v915, %v914
  %v1046 = vpack.c.b16 %v917, %v916
  %v1047 = vpack.c.b16 %v919, %v918
  %1176 = vmatprep.subr.bf16.mxu0 0
  %1177 = vmatpush1.bf16.msra.mxu0 %v920
  %1178 = vmatprep.subr.bf16.mxu0 0
  %1179 = vmatpush1.bf16.msra.mxu0 %v921
  %1180 = vmatprep.subr.bf16.mxu0 0
  %1181 = vmatpush1.bf16.msra.mxu0 %v922
  %1182 = vmatprep.subr.bf16.mxu0 0
  %1183 = vmatpush1.bf16.msra.mxu0 %v923
  %1184 = vmatprep.subr.bf16.mxu0 0
  %1185 = vmatpush1.bf16.msra.mxu0 %v924
  %1186 = vmatprep.subr.bf16.mxu0 0
  %1187 = vmatpush1.bf16.msra.mxu0 %v925
  %1188 = vmatprep.subr.bf16.mxu0 0
  %1189 = vmatpush1.bf16.msra.mxu0 %v926
  %1190 = vmatprep.subr.bf16.mxu0 0
  %1191 = vmatpush1.bf16.msra.mxu0 %v927
  %1192 = vmatprep.subr.bf16.mxu0 0
  %1193 = vmatpush1.bf16.msra.mxu0 %v928
  %1194 = vmatprep.subr.bf16.mxu0 0
  %1195 = vmatpush1.bf16.msra.mxu0 %v929
  %1196 = vmatprep.subr.bf16.mxu0 0
  %1197 = vmatpush1.bf16.msra.mxu0 %v930
  %1198 = vmatprep.subr.bf16.mxu0 0
  %1199 = vmatpush1.bf16.msra.mxu0 %v931
  %1200 = vmatprep.subr.bf16.mxu0 0
  %1201 = vmatpush1.bf16.msra.mxu0 %v932
  %1202 = vmatprep.subr.bf16.mxu0 0
  %1203 = vmatpush1.bf16.msra.mxu0 %v933
  %1204 = vmatprep.subr.bf16.mxu0 0
  %1205 = vmatpush1.bf16.msra.mxu0 %v934
  %1206 = vmatprep.subr.bf16.mxu0 0
  %1207 = vmatpush1.bf16.msra.mxu0 %v935
  %1208 = vmatprep.mubr.bf16.mxu0 %v377
  %1209 = vmatmul.mubr.bf16.gmra.mrb[0].mxu0 %v376
  %v1210 = vpop.f32.mrb[0].mxu0
  %v1211 = vadd.f32 0.0, %v1210
  %v1212 = vpop.f32.mrb[0].mxu0
  %v1213 = vpop.f32.mrb[0].mxu0
  %v1214 = vadd.f32 0.0, %v1213
  %v1215 = vpop.f32.mrb[0].mxu0
  %1216 = vdwg.mxu0
  %1217 = vmatprep.subr.bf16.mxu0 0
  %1218 = vmatpush1.bf16.msra.mxu0 %v936
  %1219 = vmatprep.subr.bf16.mxu0 0
  %1220 = vmatpush1.bf16.msra.mxu0 %v937
  %1221 = vmatprep.subr.bf16.mxu0 0
  %1222 = vmatpush1.bf16.msra.mxu0 %v938
  %1223 = vmatprep.subr.bf16.mxu0 0
  %1224 = vmatpush1.bf16.msra.mxu0 %v939
  %1225 = vmatprep.subr.bf16.mxu0 0
  %1226 = vmatpush1.bf16.msra.mxu0 %v940
  %1227 = vmatprep.subr.bf16.mxu0 0
  %1228 = vmatpush1.bf16.msra.mxu0 %v941
  %1229 = vmatprep.subr.bf16.mxu0 0
  %1230 = vmatpush1.bf16.msra.mxu0 %v942
  %1231 = vmatprep.subr.bf16.mxu0 0
  %1232 = vmatpush1.bf16.msra.mxu0 %v943
  %1233 = vmatprep.subr.bf16.mxu0 0
  %1234 = vmatpush1.bf16.msra.mxu0 %v944
  %1235 = vmatprep.subr.bf16.mxu0 0
  %1236 = vmatpush1.bf16.msra.mxu0 %v945
  %1237 = vmatprep.subr.bf16.mxu0 0
  %1238 = vmatpush1.bf16.msra.mxu0 %v946
  %1239 = vmatprep.subr.bf16.mxu0 0
  %1240 = vmatpush1.bf16.msra.mxu0 %v947
  %1241 = vmatprep.subr.bf16.mxu0 0
  %1242 = vmatpush1.bf16.msra.mxu0 %v948
  %1243 = vmatprep.subr.bf16.mxu0 0
  %1244 = vmatpush1.bf16.msra.mxu0 %v949
  %1245 = vmatprep.subr.bf16.mxu0 0
  %1246 = vmatpush1.bf16.msra.mxu0 %v950
  %1247 = vmatprep.subr.bf16.mxu0 0
  %1248 = vmatpush1.bf16.msra.mxu0 %v951
  %1249 = vmatprep.mubr.bf16.mxu0 %v379
  %1250 = vmatmul.mubr.bf16.gmra.mrb[0].mxu0 %v378
  %v1251 = vpop.f32.mrb[0].mxu0
  %v1252 = vadd.f32 %v1211, %v1251
  %v1253 = vpop.f32.mrb[0].mxu0
  %v1254 = vpop.f32.mrb[0].mxu0
  %v1255 = vadd.f32 %v1214, %v1254
  %v1256 = vpop.f32.mrb[0].mxu0
  %1257 = vdwg.mxu0
  %1258 = vmatprep.subr.bf16.mxu0 0
  %1259 = vmatpush1.bf16.msra.mxu0 %v952
  %1260 = vmatprep.subr.bf16.mxu0 0
  %1261 = vmatpush1.bf16.msra.mxu0 %v953
  %1262 = vmatprep.subr.bf16.mxu0 0
  %1263 = vmatpush1.bf16.msra.mxu0 %v954
  %1264 = vmatprep.subr.bf16.mxu0 0
  %1265 = vmatpush1.bf16.msra.mxu0 %v955
  %1266 = vmatprep.subr.bf16.mxu0 0
  %1267 = vmatpush1.bf16.msra.mxu0 %v956
  %1268 = vmatprep.subr.bf16.mxu0 0
  %1269 = vmatpush1.bf16.msra.mxu0 %v957
  %1270 = vmatprep.subr.bf16.mxu0 0
  %1271 = vmatpush1.bf16.msra.mxu0 %v958
  %1272 = vmatprep.subr.bf16.mxu0 0
  %1273 = vmatpush1.bf16.msra.mxu0 %v959
  %1274 = vmatprep.subr.bf16.mxu0 0
  %1275 = vmatpush1.bf16.msra.mxu0 %v960
  %1276 = vmatprep.subr.bf16.mxu0 0
  %1277 = vmatpush1.bf16.msra.mxu0 %v961
  %1278 = vmatprep.subr.bf16.mxu0 0
  %1279 = vmatpush1.bf16.msra.mxu0 %v962
  %1280 = vmatprep.subr.bf16.mxu0 0
  %1281 = vmatpush1.bf16.msra.mxu0 %v963
  %1282 = vmatprep.subr.bf16.mxu0 0
  %1283 = vmatpush1.bf16.msra.mxu0 %v964
  %1284 = vmatprep.subr.bf16.mxu0 0
  %1285 = vmatpush1.bf16.msra.mxu0 %v965
  %1286 = vmatprep.subr.bf16.mxu0 0
  %1287 = vmatpush1.bf16.msra.mxu0 %v966
  %1288 = vmatprep.subr.bf16.mxu0 0
  %1289 = vmatpush1.bf16.msra.mxu0 %v967
  %1290 = vmatprep.mubr.bf16.mxu0 %v381
  %1291 = vmatmul.mubr.bf16.gmra.mrb[0].mxu0 %v380
  %v1292 = vpop.f32.mrb[0].mxu0
  %v1293 = vadd.f32 %v1252, %v1292
  %v1294 = vpop.f32.mrb[0].mxu0
  %v1295 = vpop.f32.mrb[0].mxu0
  %v1296 = vadd.f32 %v1255, %v1295
  %v1297 = vpop.f32.mrb[0].mxu0
  %1298 = vdwg.mxu0
  %1299 = vmatprep.subr.bf16.mxu0 0
  %1300 = vmatpush1.bf16.msra.mxu0 %v968
  %1301 = vmatprep.subr.bf16.mxu0 0
  %1302 = vmatpush1.bf16.msra.mxu0 %v969
  %1303 = vmatprep.subr.bf16.mxu0 0
  %1304 = vmatpush1.bf16.msra.mxu0 %v970
  %1305 = vmatprep.subr.bf16.mxu0 0
  %1306 = vmatpush1.bf16.msra.mxu0 %v971
  %1307 = vmatprep.subr.bf16.mxu0 0
  %1308 = vmatpush1.bf16.msra.mxu0 %v972
  %1309 = vmatprep.subr.bf16.mxu0 0
  %1310 = vmatpush1.bf16.msra.mxu0 %v973
  %1311 = vmatprep.subr.bf16.mxu0 0
  %1312 = vmatpush1.bf16.msra.mxu0 %v974
  %1313 = vmatprep.subr.bf16.mxu0 0
  %1314 = vmatpush1.bf16.msra.mxu0 %v975
  %1315 = vmatprep.subr.bf16.mxu0 0
  %1316 = vmatpush1.bf16.msra.mxu0 %v976
  %1317 = vmatprep.subr.bf16.mxu0 0
  %1318 = vmatpush1.bf16.msra.mxu0 %v977
  %1319 = vmatprep.subr.bf16.mxu0 0
  %1320 = vmatpush1.bf16.msra.mxu0 %v978
  %1321 = vmatprep.subr.bf16.mxu0 0
  %1322 = vmatpush1.bf16.msra.mxu0 %v979
  %1323 = vmatprep.subr.bf16.mxu0 0
  %1324 = vmatpush1.bf16.msra.mxu0 %v980
  %1325 = vmatprep.subr.bf16.mxu0 0
  %1326 = vmatpush1.bf16.msra.mxu0 %v981
  %1327 = vmatprep.subr.bf16.mxu0 0
  %1328 = vmatpush1.bf16.msra.mxu0 %v982
  %1329 = vmatprep.subr.bf16.mxu0 0
  %1330 = vmatpush1.bf16.msra.mxu0 %v983
  %1331 = vmatprep.mubr.bf16.mxu0 %v383
  %1332 = vmatmul.mubr.bf16.gmra.mrb[0].mxu0 %v382
  %v1333 = vpop.f32.mrb[0].mxu0
  %v1334 = vadd.f32 %v1293, %v1333
  %v1335 = vpop.f32.mrb[0].mxu0
  %v1336 = vpop.f32.mrb[0].mxu0
  %v1337 = vadd.f32 %v1296, %v1336
  %v1338 = vpop.f32.mrb[0].mxu0
  %1339 = vdwg.mxu0
  %1340 = vmatprep.subr.bf16.mxu0 0
  %1341 = vmatpush1.bf16.msra.mxu0 %v984
  %1342 = vmatprep.subr.bf16.mxu0 0
  %1343 = vmatpush1.bf16.msra.mxu0 %v985
  %1344 = vmatprep.subr.bf16.mxu0 0
  %1345 = vmatpush1.bf16.msra.mxu0 %v986
  %1346 = vmatprep.subr.bf16.mxu0 0
  %1347 = vmatpush1.bf16.msra.mxu0 %v987
  %1348 = vmatprep.subr.bf16.mxu0 0
  %1349 = vmatpush1.bf16.msra.mxu0 %v988
  %1350 = vmatprep.subr.bf16.mxu0 0
  %1351 = vmatpush1.bf16.msra.mxu0 %v989
  %1352 = vmatprep.subr.bf16.mxu0 0
  %1353 = vmatpush1.bf16.msra.mxu0 %v990
  %1354 = vmatprep.subr.bf16.mxu0 0
  %1355 = vmatpush1.bf16.msra.mxu0 %v991
  %1356 = vmatprep.subr.bf16.mxu0 0
  %1357 = vmatpush1.bf16.msra.mxu0 %v992
  %1358 = vmatprep.subr.bf16.mxu0 0
  %1359 = vmatpush1.bf16.msra.mxu0 %v993
  %1360 = vmatprep.subr.bf16.mxu0 0
  %1361 = vmatpush1.bf16.msra.mxu0 %v994
  %1362 = vmatprep.subr.bf16.mxu0 0
  %1363 = vmatpush1.bf16.msra.mxu0 %v995
  %1364 = vmatprep.subr.bf16.mxu0 0
  %1365 = vmatpush1.bf16.msra.mxu0 %v996
  %1366 = vmatprep.subr.bf16.mxu0 0
  %1367 = vmatpush1.bf16.msra.mxu0 %v997
  %1368 = vmatprep.subr.bf16.mxu0 0
  %1369 = vmatpush1.bf16.msra.mxu0 %v998
  %1370 = vmatprep.subr.bf16.mxu0 0
  %1371 = vmatpush1.bf16.msra.mxu0 %v999
  %1372 = vmatprep.mubr.bf16.mxu0 %v385
  %1373 = vmatmul.mubr.bf16.gmra.mrb[0].mxu0 %v384
  %v1374 = vpop.f32.mrb[0].mxu0
  %v1375 = vadd.f32 %v1334, %v1374
  %v1376 = vpop.f32.mrb[0].mxu0
  %v1377 = vpop.f32.mrb[0].mxu0
  %v1378 = vadd.f32 %v1337, %v1377
  %v1379 = vpop.f32.mrb[0].mxu0
  %1380 = vdwg.mxu0
  %1381 = vmatprep.subr.bf16.mxu0 0
  %1382 = vmatpush1.bf16.msra.mxu0 %v1000
  %1383 = vmatprep.subr.bf16.mxu0 0
  %1384 = vmatpush1.bf16.msra.mxu0 %v1001
  %1385 = vmatprep.subr.bf16.mxu0 0
  %1386 = vmatpush1.bf16.msra.mxu0 %v1002
  %1387 = vmatprep.subr.bf16.mxu0 0
  %1388 = vmatpush1.bf16.msra.mxu0 %v1003
  %1389 = vmatprep.subr.bf16.mxu0 0
  %1390 = vmatpush1.bf16.msra.mxu0 %v1004
  %1391 = vmatprep.subr.bf16.mxu0 0
  %1392 = vmatpush1.bf16.msra.mxu0 %v1005
  %1393 = vmatprep.subr.bf16.mxu0 0
  %1394 = vmatpush1.bf16.msra.mxu0 %v1006
  %1395 = vmatprep.subr.bf16.mxu0 0
  %1396 = vmatpush1.bf16.msra.mxu0 %v1007
  %1397 = vmatprep.subr.bf16.mxu0 0
  %1398 = vmatpush1.bf16.msra.mxu0 %v1008
  %1399 = vmatprep.subr.bf16.mxu0 0
  %1400 = vmatpush1.bf16.msra.mxu0 %v1009
  %1401 = vmatprep.subr.bf16.mxu0 0
  %1402 = vmatpush1.bf16.msra.mxu0 %v1010
  %1403 = vmatprep.subr.bf16.mxu0 0
  %1404 = vmatpush1.bf16.msra.mxu0 %v1011
  %1405 = vmatprep.subr.bf16.mxu0 0
  %1406 = vmatpush1.bf16.msra.mxu0 %v1012
  %1407 = vmatprep.subr.bf16.mxu0 0
  %1408 = vmatpush1.bf16.msra.mxu0 %v1013
  %1409 = vmatprep.subr.bf16.mxu0 0
  %1410 = vmatpush1.bf16.msra.mxu0 %v1014
  %1411 = vmatprep.subr.bf16.mxu0 0
  %1412 = vmatpush1.bf16.msra.mxu0 %v1015
  %1413 = vmatprep.mubr.bf16.mxu0 %v387
  %1414 = vmatmul.mubr.bf16.gmra.mrb[0].mxu0 %v386
  %v1415 = vpop.f32.mrb[0].mxu0
  %v1416 = vadd.f32 %v1375, %v1415
  %v1417 = vpop.f32.mrb[0].mxu0
  %v1418 = vpop.f32.mrb[0].mxu0
  %v1419 = vadd.f32 %v1378, %v1418
  %v1420 = vpop.f32.mrb[0].mxu0
  %1421 = vdwg.mxu0
  %1422 = vmatprep.subr.bf16.mxu0 0
  %1423 = vmatpush1.bf16.msra.mxu0 %v1016
  %1424 = vmatprep.subr.bf16.mxu0 0
  %1425 = vmatpush1.bf16.msra.mxu0 %v1017
  %1426 = vmatprep.subr.bf16.mxu0 0
  %1427 = vmatpush1.bf16.msra.mxu0 %v1018
  %1428 = vmatprep.subr.bf16.mxu0 0
  %1429 = vmatpush1.bf16.msra.mxu0 %v1019
  %1430 = vmatprep.subr.bf16.mxu0 0
  %1431 = vmatpush1.bf16.msra.mxu0 %v1020
  %1432 = vmatprep.subr.bf16.mxu0 0
  %1433 = vmatpush1.bf16.msra.mxu0 %v1021
  %1434 = vmatprep.subr.bf16.mxu0 0
  %1435 = vmatpush1.bf16.msra.mxu0 %v1022
  %1436 = vmatprep.subr.bf16.mxu0 0
  %1437 = vmatpush1.bf16.msra.mxu0 %v1023
  %1438 = vmatprep.subr.bf16.mxu0 0
  %1439 = vmatpush1.bf16.msra.mxu0 %v1024
  %1440 = vmatprep.subr.bf16.mxu0 0
  %1441 = vmatpush1.bf16.msra.mxu0 %v1025
  %1442 = vmatprep.subr.bf16.mxu0 0
  %1443 = vmatpush1.bf16.msra.mxu0 %v1026
  %1444 = vmatprep.subr.bf16.mxu0 0
  %1445 = vmatpush1.bf16.msra.mxu0 %v1027
  %1446 = vmatprep.subr.bf16.mxu0 0
  %1447 = vmatpush1.bf16.msra.mxu0 %v1028
  %1448 = vmatprep.subr.bf16.mxu0 0
  %1449 = vmatpush1.bf16.msra.mxu0 %v1029
  %1450 = vmatprep.subr.bf16.mxu0 0
  %1451 = vmatpush1.bf16.msra.mxu0 %v1030
  %1452 = vmatprep.subr.bf16.mxu0 0
  %1453 = vmatpush1.bf16.msra.mxu0 %v1031
  %1454 = vmatprep.mubr.bf16.mxu0 %v389
  %1455 = vmatmul.mubr.bf16.gmra.mrb[0].mxu0 %v388
  %v1456 = vpop.f32.mrb[0].mxu0
  %v1457 = vadd.f32 %v1416, %v1456
  %v1458 = vpop.f32.mrb[0].mxu0
  %v1459 = vpop.f32.mrb[0].mxu0
  %v1460 = vadd.f32 %v1419, %v1459
  %v1461 = vpop.f32.mrb[0].mxu0
  %1462 = vdwg.mxu0
  %1463 = vmatprep.subr.bf16.mxu0 0
  %1464 = vmatpush1.bf16.msra.mxu0 %v1032
  %1465 = vmatprep.subr.bf16.mxu0 0
  %1466 = vmatpush1.bf16.msra.mxu0 %v1033
  %1467 = vmatprep.subr.bf16.mxu0 0
  %1468 = vmatpush1.bf16.msra.mxu0 %v1034
  %1469 = vmatprep.subr.bf16.mxu0 0
  %1470 = vmatpush1.bf16.msra.mxu0 %v1035
  %1471 = vmatprep.subr.bf16.mxu0 0
  %1472 = vmatpush1.bf16.msra.mxu0 %v1036
  %1473 = vmatprep.subr.bf16.mxu0 0
  %1474 = vmatpush1.bf16.msra.mxu0 %v1037
  %1475 = vmatprep.subr.bf16.mxu0 0
  %1476 = vmatpush1.bf16.msra.mxu0 %v1038
  %1477 = vmatprep.subr.bf16.mxu0 0
  %1478 = vmatpush1.bf16.msra.mxu0 %v1039
  %1479 = vmatprep.subr.bf16.mxu0 0
  %1480 = vmatpush1.bf16.msra.mxu0 %v1040
  %1481 = vmatprep.subr.bf16.mxu0 0
  %1482 = vmatpush1.bf16.msra.mxu0 %v1041
  %1483 = vmatprep.subr.bf16.mxu0 0
  %1484 = vmatpush1.bf16.msra.mxu0 %v1042
  %1485 = vmatprep.subr.bf16.mxu0 0
  %1486 = vmatpush1.bf16.msra.mxu0 %v1043
  %1487 = vmatprep.subr.bf16.mxu0 0
  %1488 = vmatpush1.bf16.msra.mxu0 %v1044
  %1489 = vmatprep.subr.bf16.mxu0 0
  %1490 = vmatpush1.bf16.msra.mxu0 %v1045
  %1491 = vmatprep.subr.bf16.mxu0 0
  %1492 = vmatpush1.bf16.msra.mxu0 %v1046
  %1493 = vmatprep.subr.bf16.mxu0 0
  %1494 = vmatpush1.bf16.msra.mxu0 %v1047
  %1495 = vmatprep.mubr.bf16.mxu0 %v391
  %1496 = vmatmul.mubr.bf16.gmra.mrb[0].mxu0 %v390
  %v1497 = vpop.f32.mrb[0].mxu0
  %v1498 = vadd.f32 %v1457, %v1497
  %v1499 = vpop.f32.mrb[0].mxu0
  %v1500 = vpop.f32.mrb[0].mxu0
  %v1501 = vadd.f32 %v1460, %v1500
  %v1502 = vpop.f32.mrb[0].mxu0
  %1503 = vdwg.mxu0
  %v1506 = vunpack.c.l.b16 %v51
  %v1507 = vunpack.c.l.b16 %v52
  %v1508 = vpack.c.b16 %v1507, %v1506
  %v1512 = vunpack.c.l.b16 %v53
  %v1513 = vunpack.c.l.b16 %v54
  %v1514 = vunpack.c.l.b16 %v55
  %v1515 = vpack.c.b16 %v1513, %v1512
  %v1516 = vpack.c.b16 %v1514, %v1514
  %vm1518 = vcmask 162816
  %v1520 = vsel %vm1518, %v1508, 0
  %vm1522 = vcmask 1041408
  %v1524 = vsel %vm1522, %v1516, 0
  %1526 = vmatprep.subr.bf16.mxu0 0
  %1527 = vmatpush1.bf16.msra.mxu0 %v1515
  %1528 = vmatprep.subr.bf16.mxu0 0
  %1529 = vmatpush1.bf16.msra.mxu0 %v1524
  %1530 = vmatprep.subr.bf16.mxu0 0
  %1531 = vmatpush1.bf16.msra.mxu0 0
  %1532 = vmatprep.subr.bf16.mxu0 0
  %1533 = vmatpush1.bf16.msra.mxu0 0
  %1534 = vmatprep.subr.bf16.mxu0 0
  %1535 = vmatpush1.bf16.msra.mxu0 0
  %1536 = vmatprep.subr.bf16.mxu0 0
  %1537 = vmatpush1.bf16.msra.mxu0 0
  %1538 = vmatprep.subr.bf16.mxu0 0
  %1539 = vmatpush1.bf16.msra.mxu0 0
  %1540 = vmatprep.subr.bf16.mxu0 0
  %1541 = vmatpush1.bf16.msra.mxu0 0
  %1542 = vmatprep.subr.bf16.mxu0 0
  %1543 = vmatpush1.bf16.msra.mxu0 0
  %1544 = vmatprep.subr.bf16.mxu0 0
  %1545 = vmatpush1.bf16.msra.mxu0 0
  %1546 = vmatprep.subr.bf16.mxu0 0
  %1547 = vmatpush1.bf16.msra.mxu0 0
  %1548 = vmatprep.subr.bf16.mxu0 0
  %1549 = vmatpush1.bf16.msra.mxu0 0
  %1550 = vmatprep.subr.bf16.mxu0 0
  %1551 = vmatpush1.bf16.msra.mxu0 0
  %1552 = vmatprep.subr.bf16.mxu0 0
  %1553 = vmatpush1.bf16.msra.mxu0 0
  %1554 = vmatprep.subr.bf16.mxu0 0
  %1555 = vmatpush1.bf16.msra.mxu0 0
  %1556 = vmatprep.subr.bf16.mxu0 0
  %1557 = vmatpush1.bf16.msra.mxu0 0
  %1558 = vmatprep.mubr.bf16.mxu0 0
  %1559 = vmatmul.mubr.bf16.gmra.mrb[0].mxu0 %v1520
  %v1560 = vpop.f32.mrb[0].mxu0
  %v1561 = vadd.f32 %v1498, %v1560
  %v1562 = vpop.f32.mrb[0].mxu0
  %v1563 = vpop.f32.mrb[0].mxu0
  %v1564 = vadd.f32 %v1501, %v1563
  %v1565 = vpop.f32.mrb[0].mxu0
  %1566 = vdwg.mxu0
  %v1567 = vld [vmem:[%s2] sm:$0xff]
  %v1568 = vld [vmem:[%s2 + $0x8] sm:$0xff]
  %v1569 = vld [vmem:[%s2 + $0x10] sm:$0xf]
  %v1570 = vld [vmem:[%s2 + $0x14] sm:$0xff]
  %v1571 = vld [vmem:[%s2 + $0x1c] sm:$0xff]
  %v1572 = vld [vmem:[%s2 + $0x24] sm:$0xf]
  %v1573 = vld [vmem:[%s6] sm:$0xf]
  %v1574 = vld [vmem:[%s6 + $0x4] sm:$0xf]
  %v1575 = vld [vmem:[%s6 + $0x8] sm:$0xf]
  %v1576 = vld [vmem:[%s6 + $0xc] sm:$0xf]
  %v1577 = vld [vmem:[%s6 + $0x10] sm:$0xf]
  %v1578 = vld [vmem:[%s6 + $0x14] sm:$0xf]
  %v1579 = vld [vmem:[%s6 + $0x18] sm:$0xf]
  %v1580 = vld [vmem:[%s6 + $0x1c] sm:$0xf]
  %v1581 = vld [vmem:[%s6 + $0x20] sm:$0xf]
  %v1582 = vld [vmem:[%s6 + $0x24] sm:$0xf]
  %v1583 = vld [vmem:[%s6 + $0x28] sm:$0xf]
  %v1584 = vld [vmem:[%s6 + $0x2c] sm:$0xf]
  %v1585 = vld [vmem:[%s6 + $0x30] sm:$0xf]
  %v1586 = vld [vmem:[%s6 + $0x34] sm:$0xf]
  %v1587 = vld [vmem:[%s6 + $0x38] sm:$0xf]
  %v1588 = vld [vmem:[%s6 + $0x3c] sm:$0xf]
  %v1589 = vld [vmem:[%s6 + $0x40] sm:$0xf]
  %v1590 = vld [vmem:[%s6 + $0x44] sm:$0xf]
  %v1591 = vld [vmem:[%s6 + $0x48] sm:$0xf]
  %v1592 = vld [vmem:[%s6 + $0x4c] sm:$0xf]
  %v1593 = vld [vmem:[%s6 + $0x50] sm:$0xf]
  %v1594 = vld [vmem:[%s6 + $0x54] sm:$0xf]
  %v1595 = vld [vmem:[%s6 + $0x58] sm:$0xf]
  %v1596 = vld [vmem:[%s6 + $0x5c] sm:$0xf]
  %v1597 = vld [vmem:[%s6 + $0x60] sm:$0xf]
  %v1598 = vld [vmem:[%s6 + $0x64] sm:$0xf]
  %v1599 = vld [vmem:[%s6 + $0x68] sm:$0xf]
  %v1600 = vld [vmem:[%s6 + $0x6c] sm:$0xf]
  %v1601 = vld [vmem:[%s6 + $0x70] sm:$0xf]
  %v1602 = vld [vmem:[%s6 + $0x74] sm:$0xf]
  %v1603 = vld [vmem:[%s6 + $0x78] sm:$0xf]
  %v1604 = vld [vmem:[%s6 + $0x7c] sm:$0xf]
  %v1605 = vld [vmem:[%s6 + $0x80] sm:$0xf]
  %v1606 = vld [vmem:[%s6 + $0x84] sm:$0xf]
  %v1607 = vld [vmem:[%s6 + $0x88] sm:$0xf]
  %v1608 = vld [vmem:[%s6 + $0x8c] sm:$0xf]
  %v1609 = vld [vmem:[%s6 + $0x90] sm:$0xf]
  %v1610 = vld [vmem:[%s6 + $0x94] sm:$0xf]
  %v1611 = vld [vmem:[%s6 + $0x98] sm:$0xf]
  %v1612 = vld [vmem:[%s6 + $0x9c] sm:$0xf]
  %v1613 = vld [vmem:[%s6 + $0xa0] sm:$0xf]
  %v1614 = vld [vmem:[%s6 + $0xa4] sm:$0xf]
  %v1615 = vld [vmem:[%s6 + $0xa8] sm:$0xf]
  %v1616 = vld [vmem:[%s6 + $0xac] sm:$0xf]
  %v1617 = vld [vmem:[%s6 + $0xb0] sm:$0xf]
  %v1618 = vld [vmem:[%s6 + $0xb4] sm:$0xf]
  %v1619 = vld [vmem:[%s6 + $0xb8] sm:$0xf]
  %v1620 = vld [vmem:[%s6 + $0xbc] sm:$0xf]
  %v1621 = vld [vmem:[%s6 + $0xc0] sm:$0xf]
  %v1622 = vld [vmem:[%s6 + $0xc4] sm:$0xf]
  %v1623 = vld [vmem:[%s6 + $0xc8] sm:$0xf]
  %v1624 = vld [vmem:[%s6 + $0xcc] sm:$0xf]
  %v1625 = vld [vmem:[%s6 + $0xd0] sm:$0xf]
  %v1626 = vld [vmem:[%s6 + $0xd4] sm:$0xf]
  %v1627 = vld [vmem:[%s6 + $0xd8] sm:$0xf]
  %v1628 = vld [vmem:[%s6 + $0xdc] sm:$0xf]
  %v1629 = vld [vmem:[%s6 + $0xe0] sm:$0xf]
  %v1630 = vld [vmem:[%s6 + $0xe4] sm:$0xf]
  %v1631 = vld [vmem:[%s6 + $0xe8] sm:$0xf]
  %v1632 = vld [vmem:[%s6 + $0xec] sm:$0xf]
  %v1633 = vld [vmem:[%s6 + $0xf0] sm:$0xf]
  %v1634 = vld [vmem:[%s6 + $0xf4] sm:$0xf]
  %v1635 = vld [vmem:[%s6 + $0xf8] sm:$0xf]
  %v1636 = vld [vmem:[%s6 + $0xfc] sm:$0xf]
  %v1637 = vld [vmem:[%s6 + $0x100] sm:$0xf]
  %v1638 = vld [vmem:[%s6 + $0x104] sm:$0xf]
  %v1639 = vld [vmem:[%s6 + $0x108] sm:$0xf]
  %v1640 = vld [vmem:[%s6 + $0x10c] sm:$0xf]
  %v1641 = vld [vmem:[%s6 + $0x110] sm:$0xf]
  %v1642 = vld [vmem:[%s6 + $0x114] sm:$0xf]
  %v1643 = vld [vmem:[%s6 + $0x118] sm:$0xf]
  %v1644 = vld [vmem:[%s6 + $0x11c] sm:$0xf]
  %v1645 = vld [vmem:[%s6 + $0x120] sm:$0xf]
  %v1646 = vld [vmem:[%s6 + $0x124] sm:$0xf]
  %v1647 = vld [vmem:[%s6 + $0x128] sm:$0xf]
  %v1654 = vunpack.c.l.b16 %v1567
  %v1655 = vunpack.c.h.b16 %v1567
  %v1656 = vunpack.c.l.b16 %v1568
  %v1657 = vunpack.c.h.b16 %v1568
  %v1658 = vunpack.c.l.b16 %v1569
  %v1659 = vunpack.c.l.b16 %v1570
  %v1660 = vunpack.c.h.b16 %v1570
  %v1661 = vunpack.c.l.b16 %v1571
  %v1662 = vunpack.c.h.b16 %v1571
  %v1663 = vunpack.c.l.b16 %v1572
  %v1664 = vpack.c.b16 %v1659, %v1654
  %v1665 = vpack.c.b16 %v1660, %v1655
  %v1666 = vpack.c.b16 %v1661, %v1656
  %v1667 = vpack.c.b16 %v1662, %v1657
  %v1668 = vpack.c.b16 %v1663, %v1658
  %v1748 = vunpack.c.l.b16 %v1573
  %v1749 = vunpack.c.l.b16 %v1574
  %v1750 = vunpack.c.l.b16 %v1575
  %v1751 = vunpack.c.l.b16 %v1576
  %v1752 = vunpack.c.l.b16 %v1577
  %v1753 = vunpack.c.l.b16 %v1578
  %v1754 = vunpack.c.l.b16 %v1579
  %v1755 = vunpack.c.l.b16 %v1580
  %v1756 = vunpack.c.l.b16 %v1581
  %v1757 = vunpack.c.l.b16 %v1582
  %v1758 = vunpack.c.l.b16 %v1583
  %v1759 = vunpack.c.l.b16 %v1584
  %v1760 = vunpack.c.l.b16 %v1585
  %v1761 = vunpack.c.l.b16 %v1586
  %v1762 = vunpack.c.l.b16 %v1587
  %v1763 = vunpack.c.l.b16 %v1588
  %v1764 = vunpack.c.l.b16 %v1589
  %v1765 = vunpack.c.l.b16 %v1590
  %v1766 = vunpack.c.l.b16 %v1591
  %v1767 = vunpack.c.l.b16 %v1592
  %v1768 = vunpack.c.l.b16 %v1593
  %v1769 = vunpack.c.l.b16 %v1594
  %v1770 = vunpack.c.l.b16 %v1595
  %v1771 = vunpack.c.l.b16 %v1596
  %v1772 = vunpack.c.l.b16 %v1597
  %v1773 = vunpack.c.l.b16 %v1598
  %v1774 = vunpack.c.l.b16 %v1599
  %v1775 = vunpack.c.l.b16 %v1600
  %v1776 = vunpack.c.l.b16 %v1601
  %v1777 = vunpack.c.l.b16 %v1602
  %v1778 = vunpack.c.l.b16 %v1603
  %v1779 = vunpack.c.l.b16 %v1604
  %v1780 = vunpack.c.l.b16 %v1605
  %v1781 = vunpack.c.l.b16 %v1606
  %v1782 = vunpack.c.l.b16 %v1607
  %v1783 = vunpack.c.l.b16 %v1608
  %v1784 = vunpack.c.l.b16 %v1609
  %v1785 = vunpack.c.l.b16 %v1610
  %v1786 = vunpack.c.l.b16 %v1611
  %v1787 = vunpack.c.l.b16 %v1612
  %v1788 = vunpack.c.l.b16 %v1613
  %v1789 = vunpack.c.l.b16 %v1614
  %v1790 = vunpack.c.l.b16 %v1615
  %v1791 = vunpack.c.l.b16 %v1616
  %v1792 = vunpack.c.l.b16 %v1617
  %v1793 = vunpack.c.l.b16 %v1618
  %v1794 = vunpack.c.l.b16 %v1619
  %v1795 = vunpack.c.l.b16 %v1620
  %v1796 = vunpack.c.l.b16 %v1621
  %v1797 = vunpack.c.l.b16 %v1622
  %v1798 = vunpack.c.l.b16 %v1623
  %v1799 = vunpack.c.l.b16 %v1624
  %v1800 = vunpack.c.l.b16 %v1625
  %v1801 = vunpack.c.l.b16 %v1626
  %v1802 = vunpack.c.l.b16 %v1627
  %v1803 = vunpack.c.l.b16 %v1628
  %v1804 = vunpack.c.l.b16 %v1629
  %v1805 = vunpack.c.l.b16 %v1630
  %v1806 = vunpack.c.l.b16 %v1631
  %v1807 = vunpack.c.l.b16 %v1632
  %v1808 = vunpack.c.l.b16 %v1633
  %v1809 = vunpack.c.l.b16 %v1634
  %v1810 = vunpack.c.l.b16 %v1635
  %v1811 = vunpack.c.l.b16 %v1636
  %v1812 = vunpack.c.l.b16 %v1637
  %v1813 = vunpack.c.l.b16 %v1638
  %v1814 = vunpack.c.l.b16 %v1639
  %v1815 = vunpack.c.l.b16 %v1640
  %v1816 = vunpack.c.l.b16 %v1641
  %v1817 = vunpack.c.l.b16 %v1642
  %v1818 = vunpack.c.l.b16 %v1643
  %v1819 = vunpack.c.l.b16 %v1644
  %v1820 = vunpack.c.l.b16 %v1645
  %v1821 = vunpack.c.l.b16 %v1646
  %v1822 = vunpack.c.l.b16 %v1647
  %v1823 = vpack.c.b16 %v1749, %v1748
  %v1824 = vpack.c.b16 %v1751, %v1750
  %v1825 = vpack.c.b16 %v1753, %v1752
  %v1826 = vpack.c.b16 %v1755, %v1754
  %v1827 = vpack.c.b16 %v1757, %v1756
  %v1828 = vpack.c.b16 %v1759, %v1758
  %v1829 = vpack.c.b16 %v1761, %v1760
  %v1830 = vpack.c.b16 %v1763, %v1762
  %v1831 = vpack.c.b16 %v1765, %v1764
  %v1832 = vpack.c.b16 %v1767, %v1766
  %v1833 = vpack.c.b16 %v1769, %v1768
  %v1834 = vpack.c.b16 %v1771, %v1770
  %v1835 = vpack.c.b16 %v1773, %v1772
  %v1836 = vpack.c.b16 %v1775, %v1774
  %v1837 = vpack.c.b16 %v1777, %v1776
  %v1838 = vpack.c.b16 %v1779, %v1778
  %v1839 = vpack.c.b16 %v1781, %v1780
  %v1840 = vpack.c.b16 %v1783, %v1782
  %v1841 = vpack.c.b16 %v1785, %v1784
  %v1842 = vpack.c.b16 %v1787, %v1786
  %v1843 = vpack.c.b16 %v1789, %v1788
  %v1844 = vpack.c.b16 %v1791, %v1790
  %v1845 = vpack.c.b16 %v1793, %v1792
  %v1846 = vpack.c.b16 %v1795, %v1794
  %v1847 = vpack.c.b16 %v1797, %v1796
  %v1848 = vpack.c.b16 %v1799, %v1798
  %v1849 = vpack.c.b16 %v1801, %v1800
  %v1850 = vpack.c.b16 %v1803, %v1802
  %v1851 = vpack.c.b16 %v1805, %v1804
  %v1852 = vpack.c.b16 %v1807, %v1806
  %v1853 = vpack.c.b16 %v1809, %v1808
  %v1854 = vpack.c.b16 %v1811, %v1810
  %v1855 = vpack.c.b16 %v1813, %v1812
  %v1856 = vpack.c.b16 %v1815, %v1814
  %v1857 = vpack.c.b16 %v1817, %v1816
  %v1858 = vpack.c.b16 %v1819, %v1818
  %v1859 = vpack.c.b16 %v1821, %v1820
  %v1860 = vpack.c.b16 %v1822, %v1822
  %vm1898 = vcmask 719872
  %v1900 = vsel %vm1898, %v1668, 0
  %vm1902 = vcmask 1043456
  %v1904 = vsel %vm1902, %v1860, 0
  %1906 = vmatprep.subr.bf16.mxu0 0
  %1907 = vmatpush1.bf16.msra.mxu0 %v1823
  %1908 = vmatprep.subr.bf16.mxu0 0
  %1909 = vmatpush1.bf16.msra.mxu0 %v1824
  %1910 = vmatprep.subr.bf16.mxu0 0
  %1911 = vmatpush1.bf16.msra.mxu0 %v1825
  %1912 = vmatprep.subr.bf16.mxu0 0
  %1913 = vmatpush1.bf16.msra.mxu0 %v1826
  %1914 = vmatprep.subr.bf16.mxu0 0
  %1915 = vmatpush1.bf16.msra.mxu0 %v1827
  %1916 = vmatprep.subr.bf16.mxu0 0
  %1917 = vmatpush1.bf16.msra.mxu0 %v1828
  %1918 = vmatprep.subr.bf16.mxu0 0
  %1919 = vmatpush1.bf16.msra.mxu0 %v1829
  %1920 = vmatprep.subr.bf16.mxu0 0
  %1921 = vmatpush1.bf16.msra.mxu0 %v1830
  %1922 = vmatprep.subr.bf16.mxu0 0
  %1923 = vmatpush1.bf16.msra.mxu0 %v1831
  %1924 = vmatprep.subr.bf16.mxu0 0
  %1925 = vmatpush1.bf16.msra.mxu0 %v1832
  %1926 = vmatprep.subr.bf16.mxu0 0
  %1927 = vmatpush1.bf16.msra.mxu0 %v1833
  %1928 = vmatprep.subr.bf16.mxu0 0
  %1929 = vmatpush1.bf16.msra.mxu0 %v1834
  %1930 = vmatprep.subr.bf16.mxu0 0
  %1931 = vmatpush1.bf16.msra.mxu0 %v1835
  %1932 = vmatprep.subr.bf16.mxu0 0
  %1933 = vmatpush1.bf16.msra.mxu0 %v1836
  %1934 = vmatprep.subr.bf16.mxu0 0
  %1935 = vmatpush1.bf16.msra.mxu0 %v1837
  %1936 = vmatprep.subr.bf16.mxu0 0
  %1937 = vmatpush1.bf16.msra.mxu0 %v1838
  %1938 = vmatprep.mubr.bf16.mxu0 %v1665
  %1939 = vmatmul.mubr.bf16.gmra.mrb[0].mxu0 %v1664
  %v1940 = vpop.f32.mrb[0].mxu0
  %v1941 = vadd.f32 0.0, %v1940
  %v1942 = vpop.f32.mrb[0].mxu0
  %v1943 = vpop.f32.mrb[0].mxu0
  %v1944 = vadd.f32 0.0, %v1943
  %v1945 = vpop.f32.mrb[0].mxu0
  %1946 = vdwg.mxu0
  %1947 = vmatprep.subr.bf16.mxu0 0
  %1948 = vmatpush1.bf16.msra.mxu0 %v1839
  %1949 = vmatprep.subr.bf16.mxu0 0
  %1950 = vmatpush1.bf16.msra.mxu0 %v1840
  %1951 = vmatprep.subr.bf16.mxu0 0
  %1952 = vmatpush1.bf16.msra.mxu0 %v1841
  %1953 = vmatprep.subr.bf16.mxu0 0
  %1954 = vmatpush1.bf16.msra.mxu0 %v1842
  %1955 = vmatprep.subr.bf16.mxu0 0
  %1956 = vmatpush1.bf16.msra.mxu0 %v1843
  %1957 = vmatprep.subr.bf16.mxu0 0
  %1958 = vmatpush1.bf16.msra.mxu0 %v1844
  %1959 = vmatprep.subr.bf16.mxu0 0
  %1960 = vmatpush1.bf16.msra.mxu0 %v1845
  %1961 = vmatprep.subr.bf16.mxu0 0
  %1962 = vmatpush1.bf16.msra.mxu0 %v1846
  %1963 = vmatprep.subr.bf16.mxu0 0
  %1964 = vmatpush1.bf16.msra.mxu0 %v1847
  %1965 = vmatprep.subr.bf16.mxu0 0
  %1966 = vmatpush1.bf16.msra.mxu0 %v1848
  %1967 = vmatprep.subr.bf16.mxu0 0
  %1968 = vmatpush1.bf16.msra.mxu0 %v1849
  %1969 = vmatprep.subr.bf16.mxu0 0
  %1970 = vmatpush1.bf16.msra.mxu0 %v1850
  %1971 = vmatprep.subr.bf16.mxu0 0
  %1972 = vmatpush1.bf16.msra.mxu0 %v1851
  %1973 = vmatprep.subr.bf16.mxu0 0
  %1974 = vmatpush1.bf16.msra.mxu0 %v1852
  %1975 = vmatprep.subr.bf16.mxu0 0
  %1976 = vmatpush1.bf16.msra.mxu0 %v1853
  %1977 = vmatprep.subr.bf16.mxu0 0
  %1978 = vmatpush1.bf16.msra.mxu0 %v1854
  %1979 = vmatprep.mubr.bf16.mxu0 %v1667
  %1980 = vmatmul.mubr.bf16.gmra.mrb[0].mxu0 %v1666
  %v1981 = vpop.f32.mrb[0].mxu0
  %v1982 = vadd.f32 %v1941, %v1981
  %v1983 = vpop.f32.mrb[0].mxu0
  %v1984 = vpop.f32.mrb[0].mxu0
  %v1985 = vadd.f32 %v1944, %v1984
  %v1986 = vpop.f32.mrb[0].mxu0
  %1987 = vdwg.mxu0
  %1988 = vmatprep.subr.bf16.mxu0 0
  %1989 = vmatpush1.bf16.msra.mxu0 %v1855
  %1990 = vmatprep.subr.bf16.mxu0 0
  %1991 = vmatpush1.bf16.msra.mxu0 %v1856
  %1992 = vmatprep.subr.bf16.mxu0 0
  %1993 = vmatpush1.bf16.msra.mxu0 %v1857
  %1994 = vmatprep.subr.bf16.mxu0 0
  %1995 = vmatpush1.bf16.msra.mxu0 %v1858
  %1996 = vmatprep.subr.bf16.mxu0 0
  %1997 = vmatpush1.bf16.msra.mxu0 %v1859
  %1998 = vmatprep.subr.bf16.mxu0 0
  %1999 = vmatpush1.bf16.msra.mxu0 %v1904
  %2000 = vmatprep.subr.bf16.mxu0 0
  %2001 = vmatpush1.bf16.msra.mxu0 0
  %2002 = vmatprep.subr.bf16.mxu0 0
  %2003 = vmatpush1.bf16.msra.mxu0 0
  %2004 = vmatprep.subr.bf16.mxu0 0
  %2005 = vmatpush1.bf16.msra.mxu0 0
  %2006 = vmatprep.subr.bf16.mxu0 0
  %2007 = vmatpush1.bf16.msra.mxu0 0
  %2008 = vmatprep.subr.bf16.mxu0 0
  %2009 = vmatpush1.bf16.msra.mxu0 0
  %2010 = vmatprep.subr.bf16.mxu0 0
  %2011 = vmatpush1.bf16.msra.mxu0 0
  %2012 = vmatprep.subr.bf16.mxu0 0
  %2013 = vmatpush1.bf16.msra.mxu0 0
  %2014 = vmatprep.subr.bf16.mxu0 0
  %2015 = vmatpush1.bf16.msra.mxu0 0
  %2016 = vmatprep.subr.bf16.mxu0 0
  %2017 = vmatpush1.bf16.msra.mxu0 0
  %2018 = vmatprep.subr.bf16.mxu0 0
  %2019 = vmatpush1.bf16.msra.mxu0 0
  %2020 = vmatprep.mubr.bf16.mxu0 0
  %2021 = vmatmul.mubr.bf16.gmra.mrb[0].mxu0 %v1900
  %v2022 = vpop.f32.mrb[0].mxu0
  %v2023 = vadd.f32 %v1982, %v2022
  %v2024 = vpop.f32.mrb[0].mxu0
  %v2025 = vpop.f32.mrb[0].mxu0
  %v2026 = vadd.f32 %v1985, %v2025
  %v2027 = vpop.f32.mrb[0].mxu0
  %2028 = vdwg.mxu0
  %v2029 = vadd.f32 %v1561, %v2023
  %v2030 = vadd.f32 %v1564, %v2026
  %v2031 = vld [vmem:[%s3] sm:$0xff]
  %v2032 = vld [vmem:[%s3 + $0x8] sm:$0xff]
  %v2033 = vld [vmem:[%s3 + $0x10] sm:$0xff]
  %v2034 = vld [vmem:[%s3 + $0x18] sm:$0xff]
  %v2035 = vld [vmem:[%s3 + $0x20] sm:$0xff]
  %v2036 = vld [vmem:[%s3 + $0x28] sm:$0xff]
  %v2037 = vld [vmem:[%s7] sm:$0xf]
  %v2038 = vld [vmem:[%s7 + $0x4] sm:$0xf]
  %v2039 = vld [vmem:[%s7 + $0x8] sm:$0xf]
  %v2040 = vld [vmem:[%s7 + $0xc] sm:$0xf]
  %v2041 = vld [vmem:[%s7 + $0x10] sm:$0xf]
  %v2042 = vld [vmem:[%s7 + $0x14] sm:$0xf]
  %v2043 = vld [vmem:[%s7 + $0x18] sm:$0xf]
  %v2044 = vld [vmem:[%s7 + $0x1c] sm:$0xf]
  %v2045 = vld [vmem:[%s7 + $0x20] sm:$0xf]
  %v2046 = vld [vmem:[%s7 + $0x24] sm:$0xf]
  %v2047 = vld [vmem:[%s7 + $0x28] sm:$0xf]
  %v2048 = vld [vmem:[%s7 + $0x2c] sm:$0xf]
  %v2049 = vld [vmem:[%s7 + $0x30] sm:$0xf]
  %v2050 = vld [vmem:[%s7 + $0x34] sm:$0xf]
  %v2051 = vld [vmem:[%s7 + $0x38] sm:$0xf]
  %v2052 = vld [vmem:[%s7 + $0x3c] sm:$0xf]
  %v2053 = vld [vmem:[%s7 + $0x40] sm:$0xf]
  %v2054 = vld [vmem:[%s7 + $0x44] sm:$0xf]
  %v2055 = vld [vmem:[%s7 + $0x48] sm:$0xf]
  %v2056 = vld [vmem:[%s7 + $0x4c] sm:$0xf]
  %v2057 = vld [vmem:[%s7 + $0x50] sm:$0xf]
  %v2058 = vld [vmem:[%s7 + $0x54] sm:$0xf]
  %v2059 = vld [vmem:[%s7 + $0x58] sm:$0xf]
  %v2060 = vld [vmem:[%s7 + $0x5c] sm:$0xf]
  %v2061 = vld [vmem:[%s7 + $0x60] sm:$0xf]
  %v2062 = vld [vmem:[%s7 + $0x64] sm:$0xf]
  %v2063 = vld [vmem:[%s7 + $0x68] sm:$0xf]
  %v2064 = vld [vmem:[%s7 + $0x6c] sm:$0xf]
  %v2065 = vld [vmem:[%s7 + $0x70] sm:$0xf]
  %v2066 = vld [vmem:[%s7 + $0x74] sm:$0xf]
  %v2067 = vld [vmem:[%s7 + $0x78] sm:$0xf]
  %v2068 = vld [vmem:[%s7 + $0x7c] sm:$0xf]
  %v2069 = vld [vmem:[%s7 + $0x80] sm:$0xf]
  %v2070 = vld [vmem:[%s7 + $0x84] sm:$0xf]
  %v2071 = vld [vmem:[%s7 + $0x88] sm:$0xf]
  %v2072 = vld [vmem:[%s7 + $0x8c] sm:$0xf]
  %v2073 = vld [vmem:[%s7 + $0x90] sm:$0xf]
  %v2074 = vld [vmem:[%s7 + $0x94] sm:$0xf]
  %v2075 = vld [vmem:[%s7 + $0x98] sm:$0xf]
  %v2076 = vld [vmem:[%s7 + $0x9c] sm:$0xf]
  %v2077 = vld [vmem:[%s7 + $0xa0] sm:$0xf]
  %v2078 = vld [vmem:[%s7 + $0xa4] sm:$0xf]
  %v2079 = vld [vmem:[%s7 + $0xa8] sm:$0xf]
  %v2080 = vld [vmem:[%s7 + $0xac] sm:$0xf]
  %v2081 = vld [vmem:[%s7 + $0xb0] sm:$0xf]
  %v2082 = vld [vmem:[%s7 + $0xb4] sm:$0xf]
  %v2083 = vld [vmem:[%s7 + $0xb8] sm:$0xf]
  %v2084 = vld [vmem:[%s7 + $0xbc] sm:$0xf]
  %v2085 = vld [vmem:[%s7 + $0xc0] sm:$0xf]
  %v2086 = vld [vmem:[%s7 + $0xc4] sm:$0xf]
  %v2087 = vld [vmem:[%s7 + $0xc8] sm:$0xf]
  %v2088 = vld [vmem:[%s7 + $0xcc] sm:$0xf]
  %v2089 = vld [vmem:[%s7 + $0xd0] sm:$0xf]
  %v2090 = vld [vmem:[%s7 + $0xd4] sm:$0xf]
  %v2091 = vld [vmem:[%s7 + $0xd8] sm:$0xf]
  %v2092 = vld [vmem:[%s7 + $0xdc] sm:$0xf]
  %v2093 = vld [vmem:[%s7 + $0xe0] sm:$0xf]
  %v2094 = vld [vmem:[%s7 + $0xe4] sm:$0xf]
  %v2095 = vld [vmem:[%s7 + $0xe8] sm:$0xf]
  %v2096 = vld [vmem:[%s7 + $0xec] sm:$0xf]
  %v2097 = vld [vmem:[%s7 + $0xf0] sm:$0xf]
  %v2098 = vld [vmem:[%s7 + $0xf4] sm:$0xf]
  %v2099 = vld [vmem:[%s7 + $0xf8] sm:$0xf]
  %v2100 = vld [vmem:[%s7 + $0xfc] sm:$0xf]
  %v2101 = vld [vmem:[%s7 + $0x100] sm:$0xf]
  %v2102 = vld [vmem:[%s7 + $0x104] sm:$0xf]
  %v2103 = vld [vmem:[%s7 + $0x108] sm:$0xf]
  %v2104 = vld [vmem:[%s7 + $0x10c] sm:$0xf]
  %v2105 = vld [vmem:[%s7 + $0x110] sm:$0xf]
  %v2106 = vld [vmem:[%s7 + $0x114] sm:$0xf]
  %v2107 = vld [vmem:[%s7 + $0x118] sm:$0xf]
  %v2108 = vld [vmem:[%s7 + $0x11c] sm:$0xf]
  %v2109 = vld [vmem:[%s7 + $0x120] sm:$0xf]
  %v2110 = vld [vmem:[%s7 + $0x124] sm:$0xf]
  %v2111 = vld [vmem:[%s7 + $0x128] sm:$0xf]
  %v2112 = vld [vmem:[%s7 + $0x12c] sm:$0xf]
  %v2113 = vld [vmem:[%s7 + $0x130] sm:$0xf]
  %v2114 = vld [vmem:[%s7 + $0x134] sm:$0xf]
  %v2115 = vld [vmem:[%s7 + $0x138] sm:$0xf]
  %v2116 = vld [vmem:[%s7 + $0x13c] sm:$0xf]
  %v2117 = vld [vmem:[%s7 + $0x140] sm:$0xf]
  %v2118 = vld [vmem:[%s7 + $0x144] sm:$0xf]
  %v2119 = vld [vmem:[%s7 + $0x148] sm:$0xf]
  %v2120 = vld [vmem:[%s7 + $0x14c] sm:$0xf]
  %v2121 = vld [vmem:[%s7 + $0x150] sm:$0xf]
  %v2122 = vld [vmem:[%s7 + $0x154] sm:$0xf]
  %v2123 = vld [vmem:[%s7 + $0x158] sm:$0xf]
  %v2124 = vld [vmem:[%s7 + $0x15c] sm:$0xf]
  %v2125 = vld [vmem:[%s7 + $0x160] sm:$0xf]
  %v2126 = vld [vmem:[%s7 + $0x164] sm:$0xf]
  %v2127 = vld [vmem:[%s7 + $0x168] sm:$0xf]
  %v2128 = vld [vmem:[%s7 + $0x16c] sm:$0xf]
  %v2129 = vld [vmem:[%s7 + $0x170] sm:$0xf]
  %v2130 = vld [vmem:[%s7 + $0x174] sm:$0xf]
  %v2131 = vld [vmem:[%s7 + $0x178] sm:$0xf]
  %v2132 = vld [vmem:[%s7 + $0x17c] sm:$0xf]
  %v2139 = vunpack.c.l.b16 %v2031
  %v2140 = vunpack.c.h.b16 %v2031
  %v2141 = vunpack.c.l.b16 %v2032
  %v2142 = vunpack.c.h.b16 %v2032
  %v2143 = vunpack.c.l.b16 %v2033
  %v2144 = vunpack.c.h.b16 %v2033
  %v2145 = vunpack.c.l.b16 %v2034
  %v2146 = vunpack.c.h.b16 %v2034
  %v2147 = vunpack.c.l.b16 %v2035
  %v2148 = vunpack.c.h.b16 %v2035
  %v2149 = vunpack.c.l.b16 %v2036
  %v2150 = vunpack.c.h.b16 %v2036
  %v2151 = vpack.c.b16 %v2145, %v2139
  %v2152 = vpack.c.b16 %v2146, %v2140
  %v2153 = vpack.c.b16 %v2147, %v2141
  %v2154 = vpack.c.b16 %v2148, %v2142
  %v2155 = vpack.c.b16 %v2149, %v2143
  %v2156 = vpack.c.b16 %v2150, %v2144
  %v2259 = vunpack.c.l.b16 %v2037
  %v2260 = vunpack.c.l.b16 %v2038
  %v2261 = vunpack.c.l.b16 %v2039
  %v2262 = vunpack.c.l.b16 %v2040
  %v2263 = vunpack.c.l.b16 %v2041
  %v2264 = vunpack.c.l.b16 %v2042
  %v2265 = vunpack.c.l.b16 %v2043
  %v2266 = vunpack.c.l.b16 %v2044
  %v2267 = vunpack.c.l.b16 %v2045
  %v2268 = vunpack.c.l.b16 %v2046
  %v2269 = vunpack.c.l.b16 %v2047
  %v2270 = vunpack.c.l.b16 %v2048
  %v2271 = vunpack.c.l.b16 %v2049
  %v2272 = vunpack.c.l.b16 %v2050
  %v2273 = vunpack.c.l.b16 %v2051
  %v2274 = vunpack.c.l.b16 %v2052
  %v2275 = vunpack.c.l.b16 %v2053
  %v2276 = vunpack.c.l.b16 %v2054
  %v2277 = vunpack.c.l.b16 %v2055
  %v2278 = vunpack.c.l.b16 %v2056
  %v2279 = vunpack.c.l.b16 %v2057
  %v2280 = vunpack.c.l.b16 %v2058
  %v2281 = vunpack.c.l.b16 %v2059
  %v2282 = vunpack.c.l.b16 %v2060
  %v2283 = vunpack.c.l.b16 %v2061
  %v2284 = vunpack.c.l.b16 %v2062
  %v2285 = vunpack.c.l.b16 %v2063
  %v2286 = vunpack.c.l.b16 %v2064
  %v2287 = vunpack.c.l.b16 %v2065
  %v2288 = vunpack.c.l.b16 %v2066
  %v2289 = vunpack.c.l.b16 %v2067
  %v2290 = vunpack.c.l.b16 %v2068
  %v2291 = vunpack.c.l.b16 %v2069
  %v2292 = vunpack.c.l.b16 %v2070
  %v2293 = vunpack.c.l.b16 %v2071
  %v2294 = vunpack.c.l.b16 %v2072
  %v2295 = vunpack.c.l.b16 %v2073
  %v2296 = vunpack.c.l.b16 %v2074
  %v2297 = vunpack.c.l.b16 %v2075
  %v2298 = vunpack.c.l.b16 %v2076
  %v2299 = vunpack.c.l.b16 %v2077
  %v2300 = vunpack.c.l.b16 %v2078
  %v2301 = vunpack.c.l.b16 %v2079
  %v2302 = vunpack.c.l.b16 %v2080
  %v2303 = vunpack.c.l.b16 %v2081
  %v2304 = vunpack.c.l.b16 %v2082
  %v2305 = vunpack.c.l.b16 %v2083
  %v2306 = vunpack.c.l.b16 %v2084
  %v2307 = vunpack.c.l.b16 %v2085
  %v2308 = vunpack.c.l.b16 %v2086
  %v2309 = vunpack.c.l.b16 %v2087
  %v2310 = vunpack.c.l.b16 %v2088
  %v2311 = vunpack.c.l.b16 %v2089
  %v2312 = vunpack.c.l.b16 %v2090
  %v2313 = vunpack.c.l.b16 %v2091
  %v2314 = vunpack.c.l.b16 %v2092
  %v2315 = vunpack.c.l.b16 %v2093
  %v2316 = vunpack.c.l.b16 %v2094
  %v2317 = vunpack.c.l.b16 %v2095
  %v2318 = vunpack.c.l.b16 %v2096
  %v2319 = vunpack.c.l.b16 %v2097
  %v2320 = vunpack.c.l.b16 %v2098
  %v2321 = vunpack.c.l.b16 %v2099
  %v2322 = vunpack.c.l.b16 %v2100
  %v2323 = vunpack.c.l.b16 %v2101
  %v2324 = vunpack.c.l.b16 %v2102
  %v2325 = vunpack.c.l.b16 %v2103
  %v2326 = vunpack.c.l.b16 %v2104
  %v2327 = vunpack.c.l.b16 %v2105
  %v2328 = vunpack.c.l.b16 %v2106
  %v2329 = vunpack.c.l.b16 %v2107
  %v2330 = vunpack.c.l.b16 %v2108
  %v2331 = vunpack.c.l.b16 %v2109
  %v2332 = vunpack.c.l.b16 %v2110
  %v2333 = vunpack.c.l.b16 %v2111
  %v2334 = vunpack.c.l.b16 %v2112
  %v2335 = vunpack.c.l.b16 %v2113
  %v2336 = vunpack.c.l.b16 %v2114
  %v2337 = vunpack.c.l.b16 %v2115
  %v2338 = vunpack.c.l.b16 %v2116
  %v2339 = vunpack.c.l.b16 %v2117
  %v2340 = vunpack.c.l.b16 %v2118
  %v2341 = vunpack.c.l.b16 %v2119
  %v2342 = vunpack.c.l.b16 %v2120
  %v2343 = vunpack.c.l.b16 %v2121
  %v2344 = vunpack.c.l.b16 %v2122
  %v2345 = vunpack.c.l.b16 %v2123
  %v2346 = vunpack.c.l.b16 %v2124
  %v2347 = vunpack.c.l.b16 %v2125
  %v2348 = vunpack.c.l.b16 %v2126
  %v2349 = vunpack.c.l.b16 %v2127
  %v2350 = vunpack.c.l.b16 %v2128
  %v2351 = vunpack.c.l.b16 %v2129
  %v2352 = vunpack.c.l.b16 %v2130
  %v2353 = vunpack.c.l.b16 %v2131
  %v2354 = vunpack.c.l.b16 %v2132
  %v2355 = vpack.c.b16 %v2260, %v2259
  %v2356 = vpack.c.b16 %v2262, %v2261
  %v2357 = vpack.c.b16 %v2264, %v2263
  %v2358 = vpack.c.b16 %v2266, %v2265
  %v2359 = vpack.c.b16 %v2268, %v2267
  %v2360 = vpack.c.b16 %v2270, %v2269
  %v2361 = vpack.c.b16 %v2272, %v2271
  %v2362 = vpack.c.b16 %v2274, %v2273
  %v2363 = vpack.c.b16 %v2276, %v2275
  %v2364 = vpack.c.b16 %v2278, %v2277
  %v2365 = vpack.c.b16 %v2280, %v2279
  %v2366 = vpack.c.b16 %v2282, %v2281
  %v2367 = vpack.c.b16 %v2284, %v2283
  %v2368 = vpack.c.b16 %v2286, %v2285
  %v2369 = vpack.c.b16 %v2288, %v2287
  %v2370 = vpack.c.b16 %v2290, %v2289
  %v2371 = vpack.c.b16 %v2292, %v2291
  %v2372 = vpack.c.b16 %v2294, %v2293
  %v2373 = vpack.c.b16 %v2296, %v2295
  %v2374 = vpack.c.b16 %v2298, %v2297
  %v2375 = vpack.c.b16 %v2300, %v2299
  %v2376 = vpack.c.b16 %v2302, %v2301
  %v2377 = vpack.c.b16 %v2304, %v2303
  %v2378 = vpack.c.b16 %v2306, %v2305
  %v2379 = vpack.c.b16 %v2308, %v2307
  %v2380 = vpack.c.b16 %v2310, %v2309
  %v2381 = vpack.c.b16 %v2312, %v2311
  %v2382 = vpack.c.b16 %v2314, %v2313
  %v2383 = vpack.c.b16 %v2316, %v2315
  %v2384 = vpack.c.b16 %v2318, %v2317
  %v2385 = vpack.c.b16 %v2320, %v2319
  %v2386 = vpack.c.b16 %v2322, %v2321
  %v2387 = vpack.c.b16 %v2324, %v2323
  %v2388 = vpack.c.b16 %v2326, %v2325
  %v2389 = vpack.c.b16 %v2328, %v2327
  %v2390 = vpack.c.b16 %v2330, %v2329
  %v2391 = vpack.c.b16 %v2332, %v2331
  %v2392 = vpack.c.b16 %v2334, %v2333
  %v2393 = vpack.c.b16 %v2336, %v2335
  %v2394 = vpack.c.b16 %v2338, %v2337
  %v2395 = vpack.c.b16 %v2340, %v2339
  %v2396 = vpack.c.b16 %v2342, %v2341
  %v2397 = vpack.c.b16 %v2344, %v2343
  %v2398 = vpack.c.b16 %v2346, %v2345
  %v2399 = vpack.c.b16 %v2348, %v2347
  %v2400 = vpack.c.b16 %v2350, %v2349
  %v2401 = vpack.c.b16 %v2352, %v2351
  %v2402 = vpack.c.b16 %v2354, %v2353
  %2451 = vmatprep.subr.bf16.mxu0 0
  %2452 = vmatpush1.bf16.msra.mxu0 %v2355
  %2453 = vmatprep.subr.bf16.mxu0 0
  %2454 = vmatpush1.bf16.msra.mxu0 %v2356
  %2455 = vmatprep.subr.bf16.mxu0 0
  %2456 = vmatpush1.bf16.msra.mxu0 %v2357
  %2457 = vmatprep.subr.bf16.mxu0 0
  %2458 = vmatpush1.bf16.msra.mxu0 %v2358
  %2459 = vmatprep.subr.bf16.mxu0 0
  %2460 = vmatpush1.bf16.msra.mxu0 %v2359
  %2461 = vmatprep.subr.bf16.mxu0 0
  %2462 = vmatpush1.bf16.msra.mxu0 %v2360
  %2463 = vmatprep.subr.bf16.mxu0 0
  %2464 = vmatpush1.bf16.msra.mxu0 %v2361
  %2465 = vmatprep.subr.bf16.mxu0 0
  %2466 = vmatpush1.bf16.msra.mxu0 %v2362
  %2467 = vmatprep.subr.bf16.mxu0 0
  %2468 = vmatpush1.bf16.msra.mxu0 %v2363
  %2469 = vmatprep.subr.bf16.mxu0 0
  %2470 = vmatpush1.bf16.msra.mxu0 %v2364
  %2471 = vmatprep.subr.bf16.mxu0 0
  %2472 = vmatpush1.bf16.msra.mxu0 %v2365
  %2473 = vmatprep.subr.bf16.mxu0 0
  %2474 = vmatpush1.bf16.msra.mxu0 %v2366
  %2475 = vmatprep.subr.bf16.mxu0 0
  %2476 = vmatpush1.bf16.msra.mxu0 %v2367
  %2477 = vmatprep.subr.bf16.mxu0 0
  %2478 = vmatpush1.bf16.msra.mxu0 %v2368
  %2479 = vmatprep.subr.bf16.mxu0 0
  %2480 = vmatpush1.bf16.msra.mxu0 %v2369
  %2481 = vmatprep.subr.bf16.mxu0 0
  %2482 = vmatpush1.bf16.msra.mxu0 %v2370
  %2483 = vmatprep.mubr.bf16.mxu0 %v2152
  %2484 = vmatmul.mubr.bf16.gmra.mrb[0].mxu0 %v2151
  %v2485 = vpop.f32.mrb[0].mxu0
  %v2486 = vadd.f32 0.0, %v2485
  %v2487 = vpop.f32.mrb[0].mxu0
  %v2488 = vpop.f32.mrb[0].mxu0
  %v2489 = vadd.f32 0.0, %v2488
  %v2490 = vpop.f32.mrb[0].mxu0
  %2491 = vdwg.mxu0
  %2492 = vmatprep.subr.bf16.mxu0 0
  %2493 = vmatpush1.bf16.msra.mxu0 %v2371
  %2494 = vmatprep.subr.bf16.mxu0 0
  %2495 = vmatpush1.bf16.msra.mxu0 %v2372
  %2496 = vmatprep.subr.bf16.mxu0 0
  %2497 = vmatpush1.bf16.msra.mxu0 %v2373
  %2498 = vmatprep.subr.bf16.mxu0 0
  %2499 = vmatpush1.bf16.msra.mxu0 %v2374
  %2500 = vmatprep.subr.bf16.mxu0 0
  %2501 = vmatpush1.bf16.msra.mxu0 %v2375
  %2502 = vmatprep.subr.bf16.mxu0 0
  %2503 = vmatpush1.bf16.msra.mxu0 %v2376
  %2504 = vmatprep.subr.bf16.mxu0 0
  %2505 = vmatpush1.bf16.msra.mxu0 %v2377
  %2506 = vmatprep.subr.bf16.mxu0 0
  %2507 = vmatpush1.bf16.msra.mxu0 %v2378
  %2508 = vmatprep.subr.bf16.mxu0 0
  %2509 = vmatpush1.bf16.msra.mxu0 %v2379
  %2510 = vmatprep.subr.bf16.mxu0 0
  %2511 = vmatpush1.bf16.msra.mxu0 %v2380
  %2512 = vmatprep.subr.bf16.mxu0 0
  %2513 = vmatpush1.bf16.msra.mxu0 %v2381
  %2514 = vmatprep.subr.bf16.mxu0 0
  %2515 = vmatpush1.bf16.msra.mxu0 %v2382
  %2516 = vmatprep.subr.bf16.mxu0 0
  %2517 = vmatpush1.bf16.msra.mxu0 %v2383
  %2518 = vmatprep.subr.bf16.mxu0 0
  %2519 = vmatpush1.bf16.msra.mxu0 %v2384
  %2520 = vmatprep.subr.bf16.mxu0 0
  %2521 = vmatpush1.bf16.msra.mxu0 %v2385
  %2522 = vmatprep.subr.bf16.mxu0 0
  %2523 = vmatpush1.bf16.msra.mxu0 %v2386
  %2524 = vmatprep.mubr.bf16.mxu0 %v2154
  %2525 = vmatmul.mubr.bf16.gmra.mrb[0].mxu0 %v2153
  %v2526 = vpop.f32.mrb[0].mxu0
  %v2527 = vadd.f32 %v2486, %v2526
  %v2528 = vpop.f32.mrb[0].mxu0
  %v2529 = vpop.f32.mrb[0].mxu0
  %v2530 = vadd.f32 %v2489, %v2529
  %v2531 = vpop.f32.mrb[0].mxu0
  %2532 = vdwg.mxu0
  %2533 = vmatprep.subr.bf16.mxu0 0
  %2534 = vmatpush1.bf16.msra.mxu0 %v2387
  %2535 = vmatprep.subr.bf16.mxu0 0
  %2536 = vmatpush1.bf16.msra.mxu0 %v2388
  %2537 = vmatprep.subr.bf16.mxu0 0
  %2538 = vmatpush1.bf16.msra.mxu0 %v2389
  %2539 = vmatprep.subr.bf16.mxu0 0
  %2540 = vmatpush1.bf16.msra.mxu0 %v2390
  %2541 = vmatprep.subr.bf16.mxu0 0
  %2542 = vmatpush1.bf16.msra.mxu0 %v2391
  %2543 = vmatprep.subr.bf16.mxu0 0
  %2544 = vmatpush1.bf16.msra.mxu0 %v2392
  %2545 = vmatprep.subr.bf16.mxu0 0
  %2546 = vmatpush1.bf16.msra.mxu0 %v2393
  %2547 = vmatprep.subr.bf16.mxu0 0
  %2548 = vmatpush1.bf16.msra.mxu0 %v2394
  %2549 = vmatprep.subr.bf16.mxu0 0
  %2550 = vmatpush1.bf16.msra.mxu0 %v2395
  %2551 = vmatprep.subr.bf16.mxu0 0
  %2552 = vmatpush1.bf16.msra.mxu0 %v2396
  %2553 = vmatprep.subr.bf16.mxu0 0
  %2554 = vmatpush1.bf16.msra.mxu0 %v2397
  %2555 = vmatprep.subr.bf16.mxu0 0
  %2556 = vmatpush1.bf16.msra.mxu0 %v2398
  %2557 = vmatprep.subr.bf16.mxu0 0
  %2558 = vmatpush1.bf16.msra.mxu0 %v2399
  %2559 = vmatprep.subr.bf16.mxu0 0
  %2560 = vmatpush1.bf16.msra.mxu0 %v2400
  %2561 = vmatprep.subr.bf16.mxu0 0
  %2562 = vmatpush1.bf16.msra.mxu0 %v2401
  %2563 = vmatprep.subr.bf16.mxu0 0
  %2564 = vmatpush1.bf16.msra.mxu0 %v2402
  %2565 = vmatprep.mubr.bf16.mxu0 %v2156
  %2566 = vmatmul.mubr.bf16.gmra.mrb[0].mxu0 %v2155
  %v2567 = vpop.f32.mrb[0].mxu0
  %v2568 = vadd.f32 %v2527, %v2567
  %v2569 = vpop.f32.mrb[0].mxu0
  %v2570 = vpop.f32.mrb[0].mxu0
  %v2571 = vadd.f32 %v2530, %v2570
  %v2572 = vpop.f32.mrb[0].mxu0
  %2573 = vdwg.mxu0
  %v2574 = vadd.f32 %v2029, %v2568
  %v2575 = vadd.f32 %v2030, %v2571
  %v2576 = vld [vmem:[%s8] sm:$0x1]
  %v2578 = vlaneseq
  %v2579 = vshrl.u32 %v2578, 7
  %v2580 = vsub.s32 0, %v2579
  %v2581 = vrot.slane %v2576, %v2580
  %v2583 = vadd.f32 %v2574, %v2581
  %v2584 = vadd.f32 %v2575, %v2581
  %v2585 = vmul.f32 %v2583, 0.5
  %v2586 = vmul.f32 %v2584, 0.5
  %v2587 = vmul.f32 %v2583, 0.70710677
  %v2588 = vmul.f32 %v2584, 0.70710677
  %v2589 = verf.f32.pop %v2587
  %v2590 = verf.f32.pop %v2588
  %v2591 = vadd.f32 %v2589, 1.0
  %v2592 = vadd.f32 %v2590, 1.0
  %v2593 = vmul.f32 %v2585, %v2591
  %v2594 = vmul.f32 %v2586, %v2592
  %v2595 = vld [vmem:[%s9] sm:$0xff]
  %v2596 = vld [vmem:[%s9 + $0x8] sm:$0xff]
  %v2597 = vld [vmem:[%s9 + $0x10] sm:$0xff]
  %v2598 = vld [vmem:[%s9 + $0x18] sm:$0xff]
  %v2599 = vld [vmem:[%s9 + $0x20] sm:$0xff]
  %v2600 = vld [vmem:[%s9 + $0x28] sm:$0xff]
  %v2601 = vld [vmem:[%s9 + $0x30] sm:$0xff]
  %v2602 = vld [vmem:[%s9 + $0x38] sm:$0xff]
  %v2603 = vld [vmem:[%s9 + $0x40] sm:$0xff]
  %v2604 = vld [vmem:[%s9 + $0x48] sm:$0xff]
  %v2605 = vld [vmem:[%s9 + $0x50] sm:$0xff]
  %v2606 = vld [vmem:[%s9 + $0x58] sm:$0xff]
  %v2607 = vld [vmem:[%s9 + $0x60] sm:$0xff]
  %v2608 = vld [vmem:[%s9 + $0x68] sm:$0xff]
  %v2609 = vld [vmem:[%s9 + $0x70] sm:$0xff]
  %v2610 = vld [vmem:[%s9 + $0x78] sm:$0xff]
  %v2611 = vld [vmem:[%s10] sm:$0x1]
  %v2613 = vlaneseq
  %v2614 = vshrl.u32 %v2613, 7
  %v2615 = vsub.s32 0, %v2614
  %v2616 = vrot.slane %v2611, %v2615
  %2618 = vmatprep.subr.mxu0 0.0
  %2619 = vmatpush1.msra.mxu0 %v2595
  %2620 = vmatprep.subr.mxu0 0.0
  %2621 = vmatpush1.msra.mxu0 %v2596
  %2622 = vmatprep.subr.mxu0 0.0
  %2623 = vmatpush1.msra.mxu0 %v2597
  %2624 = vmatprep.subr.mxu0 0.0
  %2625 = vmatpush1.msra.mxu0 %v2598
  %2626 = vmatprep.subr.mxu0 0.0
  %2627 = vmatpush1.msra.mxu0 %v2599
  %2628 = vmatprep.subr.mxu0 0.0
  %2629 = vmatpush1.msra.mxu0 %v2600
  %2630 = vmatprep.subr.mxu0 0.0
  %2631 = vmatpush1.msra.mxu0 %v2601
  %2632 = vmatprep.subr.mxu0 0.0
  %2633 = vmatpush1.msra.mxu0 %v2602
  %2634 = vmatprep.subr.mxu0 0.0
  %2635 = vmatpush1.msra.mxu0 %v2603
  %2636 = vmatprep.subr.mxu0 0.0
  %2637 = vmatpush1.msra.mxu0 %v2604
  %2638 = vmatprep.subr.mxu0 0.0
  %2639 = vmatpush1.msra.mxu0 %v2605
  %2640 = vmatprep.subr.mxu0 0.0
  %2641 = vmatpush1.msra.mxu0 %v2606
  %2642 = vmatprep.subr.mxu0 0.0
  %2643 = vmatpush1.msra.mxu0 %v2607
  %2644 = vmatprep.subr.mxu0 0.0
  %2645 = vmatpush1.msra.mxu0 %v2608
  %2646 = vmatprep.subr.mxu0 0.0
  %2647 = vmatpush1.msra.mxu0 %v2609
  %2648 = vmatprep.subr.mxu0 0.0
  %2649 = vmatpush1.msra.mxu0 %v2610
  %2650 = vmatprep.subr.mxu0 0.0
  %2651 = vmatpush1.msra.mxu0 0.0
  %2652 = vmatprep.subr.mxu0 0.0
  %2653 = vmatpush1.msra.mxu0 0.0
  %2654 = vmatprep.subr.mxu0 0.0
  %2655 = vmatpush1.msra.mxu0 0.0
  %2656 = vmatprep.subr.mxu0 0.0
  %2657 = vmatpush1.msra.mxu0 0.0
  %2658 = vmatprep.subr.mxu0 0.0
  %2659 = vmatpush1.msra.mxu0 0.0
  %2660 = vmatprep.subr.mxu0 0.0
  %2661 = vmatpush1.msra.mxu0 0.0
  %2662 = vmatprep.subr.mxu0 0.0
  %2663 = vmatpush1.msra.mxu0 0.0
  %2664 = vmatprep.subr.mxu0 0.0
  %2665 = vmatpush1.msra.mxu0 0.0
  %2666 = vmatprep.subr.mxu0 0.0
  %2667 = vmatpush1.msra.mxu0 0.0
  %2668 = vmatprep.subr.mxu0 0.0
  %2669 = vmatpush1.msra.mxu0 0.0
  %2670 = vmatprep.subr.mxu0 0.0
  %2671 = vmatpush1.msra.mxu0 0.0
  %2672 = vmatprep.subr.mxu0 0.0
  %2673 = vmatpush1.msra.mxu0 0.0
  %2674 = vmatprep.subr.mxu0 0.0
  %2675 = vmatpush1.msra.mxu0 0.0
  %2676 = vmatprep.subr.mxu0 0.0
  %2677 = vmatpush1.msra.mxu0 0.0
  %2678 = vmatprep.subr.mxu0 0.0
  %2679 = vmatpush1.msra.mxu0 0.0
  %2680 = vmatprep.subr.mxu0 0.0
  %2681 = vmatpush1.msra.mxu0 0.0
  %2682 = vmatprep.mubr.f32.mxu0 0.0
  %2683 = vmatmul.mubr.f32.gmra.mrb[0].mxu0 %v2593
  %v2684 = vpop.f32.mrb[0].mxu0
  %v2685 = vadd.f32 %v2616, %v2684
  %v2686 = vpop.f32.mrb[0].mxu0
  %2687 = vmatprep.mubr.f32.mxu0 0.0
  %2688 = vmatmul.mubr.f32.gmra.mrb[0].mxu0 %v2594
  %v2689 = vpop.f32.mrb[0].mxu0
  %v2690 = vadd.f32 %v2616, %v2689
  %v2691 = vpop.f32.mrb[0].mxu0
  %2692 = vdwg.mxu0
  %v2693 = vmul.f32 %v2685, 0.5
  %v2694 = vmul.f32 %v2690, 0.5
  %v2695 = vmul.f32 %v2685, 0.70710677
  %v2696 = vmul.f32 %v2690, 0.70710677
  %v2697 = verf.f32.pop %v2695
  %v2698 = verf.f32.pop %v2696
  %v2699 = vadd.f32 %v2697, 1.0
  %v2700 = vadd.f32 %v2698, 1.0
  %v2701 = vmul.f32 %v2693, %v2699
  %v2702 = vmul.f32 %v2694, %v2700
  %v2703 = vld [vmem:[%s11] sm:$0xff]
  %v2704 = vld [vmem:[%s11 + $0x8] sm:$0xff]
  %v2705 = vld [vmem:[%s11 + $0x10] sm:$0xff]
  %v2706 = vld [vmem:[%s11 + $0x18] sm:$0xff]
  %v2707 = vld [vmem:[%s11 + $0x20] sm:$0xff]
  %v2708 = vld [vmem:[%s11 + $0x28] sm:$0xff]
  %v2709 = vld [vmem:[%s11 + $0x30] sm:$0xff]
  %v2710 = vld [vmem:[%s11 + $0x38] sm:$0xff]
  %v2711 = vld [vmem:[%s11 + $0x40] sm:$0xff]
  %v2712 = vld [vmem:[%s11 + $0x48] sm:$0xff]
  %v2713 = vld [vmem:[%s11 + $0x50] sm:$0xff]
  %v2714 = vld [vmem:[%s11 + $0x58] sm:$0xff]
  %v2715 = vld [vmem:[%s11 + $0x60] sm:$0xff]
  %v2716 = vld [vmem:[%s11 + $0x68] sm:$0xff]
  %v2717 = vld [vmem:[%s11 + $0x70] sm:$0xff]
  %v2718 = vld [vmem:[%s11 + $0x78] sm:$0xff]
  %v2719 = vld [vmem:[%s12] sm:$0x1]
  %v2721 = vlaneseq
  %v2722 = vshrl.u32 %v2721, 7
  %v2723 = vsub.s32 0, %v2722
  %v2724 = vrot.slane %v2719, %v2723
  %2726 = vmatprep.subr.mxu0 0.0
  %2727 = vmatpush1.msra.mxu0 %v2703
  %2728 = vmatprep.subr.mxu0 0.0
  %2729 = vmatpush1.msra.mxu0 %v2704
  %2730 = vmatprep.subr.mxu0 0.0
  %2731 = vmatpush1.msra.mxu0 %v2705
  %2732 = vmatprep.subr.mxu0 0.0
  %2733 = vmatpush1.msra.mxu0 %v2706
  %2734 = vmatprep.subr.mxu0 0.0
  %2735 = vmatpush1.msra.mxu0 %v2707
  %2736 = vmatprep.subr.mxu0 0.0
  %2737 = vmatpush1.msra.mxu0 %v2708
  %2738 = vmatprep.subr.mxu0 0.0
  %2739 = vmatpush1.msra.mxu0 %v2709
  %2740 = vmatprep.subr.mxu0 0.0
  %2741 = vmatpush1.msra.mxu0 %v2710
  %2742 = vmatprep.subr.mxu0 0.0
  %2743 = vmatpush1.msra.mxu0 %v2711
  %2744 = vmatprep.subr.mxu0 0.0
  %2745 = vmatpush1.msra.mxu0 %v2712
  %2746 = vmatprep.subr.mxu0 0.0
  %2747 = vmatpush1.msra.mxu0 %v2713
  %2748 = vmatprep.subr.mxu0 0.0
  %2749 = vmatpush1.msra.mxu0 %v2714
  %2750 = vmatprep.subr.mxu0 0.0
  %2751 = vmatpush1.msra.mxu0 %v2715
  %2752 = vmatprep.subr.mxu0 0.0
  %2753 = vmatpush1.msra.mxu0 %v2716
  %2754 = vmatprep.subr.mxu0 0.0
  %2755 = vmatpush1.msra.mxu0 %v2717
  %2756 = vmatprep.subr.mxu0 0.0
  %2757 = vmatpush1.msra.mxu0 %v2718
  %2758 = vmatprep.subr.mxu0 0.0
  %2759 = vmatpush1.msra.mxu0 0.0
  %2760 = vmatprep.subr.mxu0 0.0
  %2761 = vmatpush1.msra.mxu0 0.0
  %2762 = vmatprep.subr.mxu0 0.0
  %2763 = vmatpush1.msra.mxu0 0.0
  %2764 = vmatprep.subr.mxu0 0.0
  %2765 = vmatpush1.msra.mxu0 0.0
  %2766 = vmatprep.subr.mxu0 0.0
  %2767 = vmatpush1.msra.mxu0 0.0
  %2768 = vmatprep.subr.mxu0 0.0
  %2769 = vmatpush1.msra.mxu0 0.0
  %2770 = vmatprep.subr.mxu0 0.0
  %2771 = vmatpush1.msra.mxu0 0.0
  %2772 = vmatprep.subr.mxu0 0.0
  %2773 = vmatpush1.msra.mxu0 0.0
  %2774 = vmatprep.subr.mxu0 0.0
  %2775 = vmatpush1.msra.mxu0 0.0
  %2776 = vmatprep.subr.mxu0 0.0
  %2777 = vmatpush1.msra.mxu0 0.0
  %2778 = vmatprep.subr.mxu0 0.0
  %2779 = vmatpush1.msra.mxu0 0.0
  %2780 = vmatprep.subr.mxu0 0.0
  %2781 = vmatpush1.msra.mxu0 0.0
  %2782 = vmatprep.subr.mxu0 0.0
  %2783 = vmatpush1.msra.mxu0 0.0
  %2784 = vmatprep.subr.mxu0 0.0
  %2785 = vmatpush1.msra.mxu0 0.0
  %2786 = vmatprep.subr.mxu0 0.0
  %2787 = vmatpush1.msra.mxu0 0.0
  %2788 = vmatprep.subr.mxu0 0.0
  %2789 = vmatpush1.msra.mxu0 0.0
  %2790 = vmatprep.mubr.f32.mxu0 0.0
  %2791 = vmatmul.mubr.f32.gmra.mrb[0].mxu0 %v2701
  %v2792 = vpop.f32.mrb[0].mxu0
  %v2793 = vadd.f32 %v2724, %v2792
  %v2794 = vpop.f32.mrb[0].mxu0
  %2795 = vmatprep.mubr.f32.mxu0 0.0
  %2796 = vmatmul.mubr.f32.gmra.mrb[0].mxu0 %v2702
  %v2797 = vpop.f32.mrb[0].mxu0
  %v2798 = vadd.f32 %v2724, %v2797
  %v2799 = vpop.f32.mrb[0].mxu0
  %2800 = vdwg.mxu0
  %v2801 = vmul.f32 %v2793, 0.5
  %v2802 = vmul.f32 %v2798, 0.5
  %v2803 = vmul.f32 %v2793, 0.70710677
  %v2804 = vmul.f32 %v2798, 0.70710677
  %v2805 = verf.f32.pop %v2803
  %v2806 = verf.f32.pop %v2804
  %v2807 = vadd.f32 %v2805, 1.0
  %v2808 = vadd.f32 %v2806, 1.0
  %v2809 = vmul.f32 %v2801, %v2807
  %v2810 = vmul.f32 %v2802, %v2808
  %v2811 = vld [vmem:[%s13] sm:$0xff]
  %v2812 = vld [vmem:[%s13 + $0x8] sm:$0xff]
  %v2813 = vld [vmem:[%s13 + $0x10] sm:$0xff]
  %v2814 = vld [vmem:[%s13 + $0x18] sm:$0xff]
  %v2815 = vld [vmem:[%s13 + $0x20] sm:$0xff]
  %v2816 = vld [vmem:[%s13 + $0x28] sm:$0xff]
  %v2817 = vld [vmem:[%s13 + $0x30] sm:$0xff]
  %v2818 = vld [vmem:[%s13 + $0x38] sm:$0xff]
  %v2819 = vld [vmem:[%s13 + $0x40] sm:$0xff]
  %v2820 = vld [vmem:[%s13 + $0x48] sm:$0xff]
  %v2821 = vld [vmem:[%s13 + $0x50] sm:$0xff]
  %v2822 = vld [vmem:[%s13 + $0x58] sm:$0xff]
  %v2823 = vld [vmem:[%s13 + $0x60] sm:$0xff]
  %v2824 = vld [vmem:[%s13 + $0x68] sm:$0xff]
  %v2825 = vld [vmem:[%s13 + $0x70] sm:$0xff]
  %v2826 = vld [vmem:[%s13 + $0x78] sm:$0xff]
  %v2827 = vld [vmem:[%s14] sm:$0x1]
  %v2829 = vlaneseq
  %v2830 = vshrl.u32 %v2829, 7
  %v2831 = vsub.s32 0, %v2830
  %v2832 = vrot.slane %v2827, %v2831
  %2834 = vmatprep.subr.mxu0 0.0
  %2835 = vmatpush1.msra.mxu0 %v2811
  %2836 = vmatprep.subr.mxu0 0.0
  %2837 = vmatpush1.msra.mxu0 %v2812
  %2838 = vmatprep.subr.mxu0 0.0
  %2839 = vmatpush1.msra.mxu0 %v2813
  %2840 = vmatprep.subr.mxu0 0.0
  %2841 = vmatpush1.msra.mxu0 %v2814
  %2842 = vmatprep.subr.mxu0 0.0
  %2843 = vmatpush1.msra.mxu0 %v2815
  %2844 = vmatprep.subr.mxu0 0.0
  %2845 = vmatpush1.msra.mxu0 %v2816
  %2846 = vmatprep.subr.mxu0 0.0
  %2847 = vmatpush1.msra.mxu0 %v2817
  %2848 = vmatprep.subr.mxu0 0.0
  %2849 = vmatpush1.msra.mxu0 %v2818
  %2850 = vmatprep.subr.mxu0 0.0
  %2851 = vmatpush1.msra.mxu0 %v2819
  %2852 = vmatprep.subr.mxu0 0.0
  %2853 = vmatpush1.msra.mxu0 %v2820
  %2854 = vmatprep.subr.mxu0 0.0
  %2855 = vmatpush1.msra.mxu0 %v2821
  %2856 = vmatprep.subr.mxu0 0.0
  %2857 = vmatpush1.msra.mxu0 %v2822
  %2858 = vmatprep.subr.mxu0 0.0
  %2859 = vmatpush1.msra.mxu0 %v2823
  %2860 = vmatprep.subr.mxu0 0.0
  %2861 = vmatpush1.msra.mxu0 %v2824
  %2862 = vmatprep.subr.mxu0 0.0
  %2863 = vmatpush1.msra.mxu0 %v2825
  %2864 = vmatprep.subr.mxu0 0.0
  %2865 = vmatpush1.msra.mxu0 %v2826
  %2866 = vmatprep.subr.mxu0 0.0
  %2867 = vmatpush1.msra.mxu0 0.0
  %2868 = vmatprep.subr.mxu0 0.0
  %2869 = vmatpush1.msra.mxu0 0.0
  %2870 = vmatprep.subr.mxu0 0.0
  %2871 = vmatpush1.msra.mxu0 0.0
  %2872 = vmatprep.subr.mxu0 0.0
  %2873 = vmatpush1.msra.mxu0 0.0
  %2874 = vmatprep.subr.mxu0 0.0
  %2875 = vmatpush1.msra.mxu0 0.0
  %2876 = vmatprep.subr.mxu0 0.0
  %2877 = vmatpush1.msra.mxu0 0.0
  %2878 = vmatprep.subr.mxu0 0.0
  %2879 = vmatpush1.msra.mxu0 0.0
  %2880 = vmatprep.subr.mxu0 0.0
  %2881 = vmatpush1.msra.mxu0 0.0
  %2882 = vmatprep.subr.mxu0 0.0
  %2883 = vmatpush1.msra.mxu0 0.0
  %2884 = vmatprep.subr.mxu0 0.0
  %2885 = vmatpush1.msra.mxu0 0.0
  %2886 = vmatprep.subr.mxu0 0.0
  %2887 = vmatpush1.msra.mxu0 0.0
  %2888 = vmatprep.subr.mxu0 0.0
  %2889 = vmatpush1.msra.mxu0 0.0
  %2890 = vmatprep.subr.mxu0 0.0
  %2891 = vmatpush1.msra.mxu0 0.0
  %2892 = vmatprep.subr.mxu0 0.0
  %2893 = vmatpush1.msra.mxu0 0.0
  %2894 = vmatprep.subr.mxu0 0.0
  %2895 = vmatpush1.msra.mxu0 0.0
  %2896 = vmatprep.subr.mxu0 0.0
  %2897 = vmatpush1.msra.mxu0 0.0
  %2898 = vmatprep.mubr.f32.mxu0 0.0
  %2899 = vmatmul.mubr.f32.gmra.mrb[0].mxu0 %v2809
  %v2900 = vpop.f32.mrb[0].mxu0
  %v2901 = vadd.f32 %v2832, %v2900
  %v2902 = vpop.f32.mrb[0].mxu0
  %2903 = vmatprep.mubr.f32.mxu0 0.0
  %2904 = vmatmul.mubr.f32.gmra.mrb[0].mxu0 %v2810
  %v2905 = vpop.f32.mrb[0].mxu0
  %v2906 = vadd.f32 %v2832, %v2905
  %v2907 = vpop.f32.mrb[0].mxu0
  %2908 = vdwg.mxu0
  %vm2909 = vcmask 64512
  %2910 = vst.msk [vmem:[%s15] sm:$0xff] %vm2909, %v2901
  %2911 = vst.msk [vmem:[%s15 + $0x8] sm:$0xff] %vm2909, %v2906
  // Predicated region
  $region62: #{property_regressors_forward.1} parent=0 // pred_check
    _
  $region63: #{property_regressors_forward.1} parent=0 // pred_check_branch
    %2913 = sbr.rel (0) target = $region65
  $region64: #{property_regressors_forward.1} parent=0 // pred_region
    _
  $region65: #{property_regressors_forward.1} parent=0 // pred_fallthru
    _
  // Predicated region
  $region66: #{property_regressors_forward.1} parent=0 // pred_check
    _
  $region67: #{property_regressors_forward.1} parent=0 // pred_check_branch
    %2915 = sbr.rel (0) target = $region69
  $region68: #{property_regressors_forward.1} parent=0 // pred_region
    _
  $region69: #{property_regressors_forward.1} parent=0 // pred_fallthru
    _

</llo_original>
